<compile_context>
chip_gen: v7x
topology: tpu7x:2x2x1
jax: 0.10.0
libtpu: 0.0.40
codegen_flags: <defaults>
</compile_context>

<pallas_src>
import jax
import jax.numpy as jnp
from jax.experimental import pallas as pl
from jax.experimental.pallas import tpu as pltpu

H1, H2, H3 = 512, 128, 32
LANE = 128


def _round_up(x, m):
    return (x + m - 1) // m * m


def dqn_mlp_kernel(x_ref,
                   w1_ref, b1_ref,
                   w2_ref, b2_ref,
                   w3_ref, b3_ref,
                   w4_ref, b4_ref,
                   out_ref):
    """Fused 4-layer MLP for one (TB, D_in) batch tile.

    Matmul operands are bf16 (weights pre-cast; activations cast in-kernel),
    accumulation + bias + ReLU are f32; each layer's stored intermediate is
    downcast to bf16 once and fed directly to the next MXU pass.
    """
    x = x_ref[...].astype(jnp.bfloat16)                         # in-kernel cast

    # layer_1: (TB, D_in) @ (D_in, 512) + b1 -> ReLU -> bf16
    h1 = jnp.dot(x, w1_ref[...], preferred_element_type=jnp.float32)
    h1 = jnp.maximum(h1 + b1_ref[...], 0.0).astype(jnp.bfloat16)

    # layer_2: (TB, 512) @ (512, 128) + b2 -> ReLU -> bf16
    h2 = jnp.dot(h1, w2_ref[...], preferred_element_type=jnp.float32)
    h2 = jnp.maximum(h2 + b2_ref[...], 0.0).astype(jnp.bfloat16)

    # layer_3: (TB, 128) @ (128, 128 [32 real]) + b3 -> ReLU -> bf16
    #          (zero-padded lanes stay exactly 0 through bias=0 and ReLU)
    h3 = jnp.dot(h2, w3_ref[...], preferred_element_type=jnp.float32)
    h3 = jnp.maximum(h3 + b3_ref[...], 0.0).astype(jnp.bfloat16)

    # layer_output: (TB, 128) @ (128, 128 [n_actions real]) + b4 (no activation)
    out = jnp.dot(h3, w4_ref[...], preferred_element_type=jnp.float32)
    out_ref[...] = (out + b4_ref[...]).astype(out_ref.dtype)


def init_params(key, input_dim, n_actions):
    """PyTorch nn.Linear-style init (U(-1/sqrt(fan_in), +)). Weights stored as
    (in, out) (pre-transposed) so the kernel computes plain x @ W."""
    dims = [(input_dim, H1), (H1, H2), (H2, H3), (H3, n_actions)]
    params = {}
    keys = jax.random.split(key, 2 * len(dims))
    for i, (fan_in, fan_out) in enumerate(dims):
        bound = 1.0 / jnp.sqrt(jnp.float32(fan_in))
        params[f"w{i + 1}"] = jax.random.uniform(
            keys[2 * i], (fan_in, fan_out), minval=-bound, maxval=bound,
            dtype=jnp.float32)
        params[f"b{i + 1}"] = jax.random.uniform(
            keys[2 * i + 1], (1, fan_out), minval=-bound, maxval=bound,
            dtype=jnp.float32)
    return params


def prepare_params(params):
    """Pad narrow dims (32 -> 128, n_actions -> 128) with zeros and cast
    weights to bf16 for the kernel. Biases stay f32 (f32 bias/ReLU path)."""
    n_actions = params["w4"].shape[1]
    h3_pad = _round_up(H3, LANE)
    na_pad = _round_up(n_actions, LANE)

    w3 = jnp.zeros((H2, h3_pad), jnp.float32).at[:, :H3].set(params["w3"])
    b3 = jnp.zeros((1, h3_pad), jnp.float32).at[:, :H3].set(params["b3"])
    w4 = jnp.zeros((h3_pad, na_pad), jnp.float32).at[:H3, :n_actions].set(params["w4"])
    b4 = jnp.zeros((1, na_pad), jnp.float32).at[:, :n_actions].set(params["b4"])

    return {
        "w1": params["w1"].astype(jnp.bfloat16), "b1": params["b1"],
        "w2": params["w2"].astype(jnp.bfloat16), "b2": params["b2"],
        "w3": w3.astype(jnp.bfloat16), "b3": b3,
        "w4": w4.astype(jnp.bfloat16), "b4": b4,
    }


def dqn_forward(obs, kparams, n_actions, *, tb=None):
    """obs: (B, D_in) f32. kparams: output of prepare_params. Returns (B, n_actions) f32.

    tb: batch tile. Default (None) = auto:
      * B <= 256  -> tb = B (single grid step; kernel is overhead-bound here)
      * B  > 256  -> tb = 256 (full-height MXU pass on v6e/v7x; grid axis is
                    "parallel" so multiple tiles shard across v7x's 2 TCs).
    On v7x with 256 < B <= 512, pass tb=128 to give each TensorCore a tile.
    """
    B, D = obs.shape
    na_pad = kparams["w4"].shape[1]

    if tb is None:
        tb = B if B <= 256 else 256

    # Avoid a wrapper pad op in the common case; only pad for ragged large B.
    if B % tb == 0:
        x, b_pad = obs, B
    else:
        b_pad = _round_up(B, tb)
        x = jnp.zeros((b_pad, D), obs.dtype).at[:B].set(obs)

    def batch_map(i):
        return (i, 0)

    def const_map(i):
        return (0, 0)

    weight_ops = (kparams["w1"], kparams["b1"],
                  kparams["w2"], kparams["b2"],
                  kparams["w3"], kparams["b3"],
                  kparams["w4"], kparams["b4"])

    in_specs = [pl.BlockSpec((tb, D), batch_map)]
    # Full-array blocks with constant index maps: weights/biases stay resident
    # in VMEM across batch tiles (no re-DMA). Total resident ~0.5 MiB — far
    # under VMEM on every generation (incl. v7x's 64 MiB).
    in_specs += [pl.BlockSpec(op.shape, const_map) for op in weight_ops]

    # Lane-dense f32 output (na_pad = 128): unmasked full-width stores.
    # TODO(synk): at replay-scale B (many thousands), emit bf16 / packed output
    # to cut the 128-lane padded writeback; irrelevant at these sizes.
    out_spec = pl.BlockSpec((tb, na_pad), batch_map)

    out = pl.pallas_call(
        dqn_mlp_kernel,
        out_shape=jax.ShapeDtypeStruct((b_pad, na_pad), jnp.float32),
        grid=(b_pad // tb,),
        in_specs=in_specs,
        out_specs=out_spec,
        compiler_params=pltpu.CompilerParams(
            dimension_semantics=("parallel",),
            vmem_limit_bytes=8 << 20),   # generous: ~0.5 MiB actually resident
    )(x, *weight_ops)

    return out[:B, :n_actions]


def reference_forward_f32(obs, params):
    """Pure-JAX f32 reference of the PyTorch forward."""
    h = jnp.maximum(obs @ params["w1"] + params["b1"], 0.0)
    h = jnp.maximum(h @ params["w2"] + params["b2"], 0.0)
    h = jnp.maximum(h @ params["w3"] + params["b3"], 0.0)
    return h @ params["w4"] + params["b4"]


def reference_forward_bf16(obs, params):
    """Reference emulating the kernel's numerics (bf16 matmul operands, f32 acc,
    f32 bias/ReLU, bf16 stored intermediates)."""
    def mm(a_bf16, w):
        return jnp.dot(a_bf16, w.astype(jnp.bfloat16),
                       preferred_element_type=jnp.float32)
    h = jnp.maximum(mm(obs.astype(jnp.bfloat16), params["w1"]) + params["b1"], 0.0)
    h = jnp.maximum(mm(h.astype(jnp.bfloat16), params["w2"]) + params["b2"], 0.0)
    h = jnp.maximum(mm(h.astype(jnp.bfloat16), params["w3"]) + params["b3"], 0.0)
    return mm(h.astype(jnp.bfloat16), params["w4"]) + params["b4"]


if __name__ == "__main__":
    key = jax.random.PRNGKey(0)
    k_params, k_obs = jax.random.split(key)

    # Replay/training-sized batch (still tiny in memory).
    # DeepQNetwork(input_dims=(16,), n_actions=4, lr=...).
    batch = 256
    input_dim = 16
    n_actions = 4

    params = init_params(k_params, input_dim, n_actions)
    kparams = prepare_params(params)
    obs = jax.random.normal(k_obs, (batch, input_dim), dtype=jnp.float32)

    out = dqn_forward(obs, kparams, n_actions)   # auto: single grid step at B=256
    out = jax.block_until_ready(out)

    ref32 = reference_forward_f32(obs, params)
    ref16 = reference_forward_bf16(obs, params)

    assert out.shape == (batch, n_actions)
    # Tight check vs. a reference using the kernel's bf16-matmul numerics.
    assert jnp.allclose(out, ref16, atol=1e-2, rtol=1e-2)
    # Semantic check vs. the f32 PyTorch forward (tolerance loosened for bf16 matmuls).
    assert jnp.allclose(out, ref32, atol=5e-2, rtol=5e-2)

    print("KERNEL_OK")
</pallas_src>

<mosaic_0001>
module attributes {stable_mosaic.version = 11 : i64} {
  func.func @dqn_mlp_kernel(%arg0: i32, %arg1: memref<256x16xf32, #tpu.memory_space<vmem>>, %arg2: memref<16x512xbf16, #tpu.memory_space<vmem>>, %arg3: memref<1x512xf32, #tpu.memory_space<vmem>>, %arg4: memref<512x128xbf16, #tpu.memory_space<vmem>>, %arg5: memref<1x128xf32, #tpu.memory_space<vmem>>, %arg6: memref<128x128xbf16, #tpu.memory_space<vmem>>, %arg7: memref<1x128xf32, #tpu.memory_space<vmem>>, %arg8: memref<128x128xbf16, #tpu.memory_space<vmem>>, %arg9: memref<1x128xf32, #tpu.memory_space<vmem>>, %arg10: memref<256x128xf32, #tpu.memory_space<vmem>>) attributes {dimension_semantics = [#tpu.dimension_semantics<parallel>], iteration_bounds = array<i64: 1>, scalar_prefetch = 0 : i64, scratch_operands = 0 : i64, tpu.core_type = #tpu.core_type<tc>, window_params = [{transform_indices = @transform_0, window_bounds = array<i64: 256, 16>}, {pipeline_mode = #tpu.pipeline_mode<synchronous>, transform_indices = @transform_1, window_bounds = array<i64: 16, 512>}, {pipeline_mode = #tpu.pipeline_mode<synchronous>, transform_indices = @transform_2, window_bounds = array<i64: 1, 512>}, {pipeline_mode = #tpu.pipeline_mode<synchronous>, transform_indices = @transform_3, window_bounds = array<i64: 512, 128>}, {pipeline_mode = #tpu.pipeline_mode<synchronous>, transform_indices = @transform_4, window_bounds = array<i64: 1, 128>}, {pipeline_mode = #tpu.pipeline_mode<synchronous>, transform_indices = @transform_5, window_bounds = array<i64: 128, 128>}, {pipeline_mode = #tpu.pipeline_mode<synchronous>, transform_indices = @transform_6, window_bounds = array<i64: 1, 128>}, {pipeline_mode = #tpu.pipeline_mode<synchronous>, transform_indices = @transform_7, window_bounds = array<i64: 128, 128>}, {pipeline_mode = #tpu.pipeline_mode<synchronous>, transform_indices = @transform_8, window_bounds = array<i64: 1, 128>}, {transform_indices = @transform_9, window_bounds = array<i64: 256, 128>}]} {
    %c0 = arith.constant 0 : index
    %c0_0 = arith.constant 0 : index
    %0 = vector.load %arg1[%c0, %c0_0] : memref<256x16xf32, #tpu.memory_space<vmem>>, vector<256x16xf32>
    %1 = arith.truncf %0 : vector<256x16xf32> to vector<256x16xbf16>
    %c0_1 = arith.constant 0 : index
    %c0_2 = arith.constant 0 : index
    %2 = vector.load %arg2[%c0_1, %c0_2] : memref<16x512xbf16, #tpu.memory_space<vmem>>, vector<16x512xbf16>
    %cst = arith.constant dense<0.000000e+00> : vector<256x512xf32>
    %3 = tpu.matmul %1, %2, %cst {dimension_numbers = #tpu.dot_dimension_numbers<[1], [0], [0], [1], [0, 0, 1, 1], [], []>} : vector<256x16xbf16>, vector<16x512xbf16>, vector<256x512xf32> -> vector<256x512xf32>
    %c0_3 = arith.constant 0 : index
    %c0_4 = arith.constant 0 : index
    %4 = vector.load %arg3[%c0_3, %c0_4] : memref<1x512xf32, #tpu.memory_space<vmem>>, vector<1x512xf32>
    %5 = vector.broadcast %4 : vector<1x512xf32> to vector<256x512xf32>
    %6 = arith.addf %3, %5 : vector<256x512xf32>
    %cst_5 = arith.constant 0.000000e+00 : f32
    %7 = vector.broadcast %cst_5 : f32 to vector<256x512xf32>
    %8 = arith.maximumf %6, %7 : vector<256x512xf32>
    %9 = arith.truncf %8 : vector<256x512xf32> to vector<256x512xbf16>
    %c0_6 = arith.constant 0 : index
    %c0_7 = arith.constant 0 : index
    %10 = vector.load %arg4[%c0_6, %c0_7] : memref<512x128xbf16, #tpu.memory_space<vmem>>, vector<512x128xbf16>
    %cst_8 = arith.constant dense<0.000000e+00> : vector<256x128xf32>
    %11 = tpu.matmul %9, %10, %cst_8 {dimension_numbers = #tpu.dot_dimension_numbers<[1], [0], [0], [1], [0, 0, 1, 1], [], []>} : vector<256x512xbf16>, vector<512x128xbf16>, vector<256x128xf32> -> vector<256x128xf32>
    %c0_9 = arith.constant 0 : index
    %c0_10 = arith.constant 0 : index
    %12 = vector.load %arg5[%c0_9, %c0_10] : memref<1x128xf32, #tpu.memory_space<vmem>>, vector<1x128xf32>
    %13 = vector.broadcast %12 : vector<1x128xf32> to vector<256x128xf32>
    %14 = arith.addf %11, %13 : vector<256x128xf32>
    %cst_11 = arith.constant 0.000000e+00 : f32
    %15 = vector.broadcast %cst_11 : f32 to vector<256x128xf32>
    %16 = arith.maximumf %14, %15 : vector<256x128xf32>
    %17 = arith.truncf %16 : vector<256x128xf32> to vector<256x128xbf16>
    %c0_12 = arith.constant 0 : index
    %c0_13 = arith.constant 0 : index
    %18 = vector.load %arg6[%c0_12, %c0_13] : memref<128x128xbf16, #tpu.memory_space<vmem>>, vector<128x128xbf16>
    %cst_14 = arith.constant dense<0.000000e+00> : vector<256x128xf32>
    %19 = tpu.matmul %17, %18, %cst_14 {dimension_numbers = #tpu.dot_dimension_numbers<[1], [0], [0], [1], [0, 0, 1, 1], [], []>} : vector<256x128xbf16>, vector<128x128xbf16>, vector<256x128xf32> -> vector<256x128xf32>
    %c0_15 = arith.constant 0 : index
    %c0_16 = arith.constant 0 : index
    %20 = vector.load %arg7[%c0_15, %c0_16] : memref<1x128xf32, #tpu.memory_space<vmem>>, vector<1x128xf32>
    %21 = vector.broadcast %20 : vector<1x128xf32> to vector<256x128xf32>
    %22 = arith.addf %19, %21 : vector<256x128xf32>
    %cst_17 = arith.constant 0.000000e+00 : f32
    %23 = vector.broadcast %cst_17 : f32 to vector<256x128xf32>
    %24 = arith.maximumf %22, %23 : vector<256x128xf32>
    %25 = arith.truncf %24 : vector<256x128xf32> to vector<256x128xbf16>
    %c0_18 = arith.constant 0 : index
    %c0_19 = arith.constant 0 : index
    %26 = vector.load %arg8[%c0_18, %c0_19] : memref<128x128xbf16, #tpu.memory_space<vmem>>, vector<128x128xbf16>
    %cst_20 = arith.constant dense<0.000000e+00> : vector<256x128xf32>
    %27 = tpu.matmul %25, %26, %cst_20 {dimension_numbers = #tpu.dot_dimension_numbers<[1], [0], [0], [1], [0, 0, 1, 1], [], []>} : vector<256x128xbf16>, vector<128x128xbf16>, vector<256x128xf32> -> vector<256x128xf32>
    %c0_21 = arith.constant 0 : index
    %c0_22 = arith.constant 0 : index
    %28 = vector.load %arg9[%c0_21, %c0_22] : memref<1x128xf32, #tpu.memory_space<vmem>>, vector<1x128xf32>
    %29 = vector.broadcast %28 : vector<1x128xf32> to vector<256x128xf32>
    %30 = arith.addf %27, %29 : vector<256x128xf32>
    %c0_23 = arith.constant 0 : index
    %c0_24 = arith.constant 0 : index
    %31 = vector.load %arg10[%c0_23, %c0_24] : memref<256x128xf32, #tpu.memory_space<vmem>>, vector<256x128xf32>
    tpu.vector_store %arg10[%c0_23, %c0_24], %30 {strides = array<i32>} : memref<256x128xf32, #tpu.memory_space<vmem>>, vector<256x128xf32>,
    return
  }
  func.func @transform_0(%arg0: i32) -> (i32, i32) {
    %c0_i32 = arith.constant 0 : i32
    %c0_i32_0 = arith.constant 0 : i32
    return %arg0, %c0_i32 : i32, i32
  }
  func.func @transform_1(%arg0: i32) -> (i32, i32) {
    %c0_i32 = arith.constant 0 : i32
    %c0_i32_0 = arith.constant 0 : i32
    %c0_i32_1 = arith.constant 0 : i32
    return %c0_i32, %c0_i32_0 : i32, i32
  }
  func.func @transform_2(%arg0: i32) -> (i32, i32) {
    %c0_i32 = arith.constant 0 : i32
    %c0_i32_0 = arith.constant 0 : i32
    %c0_i32_1 = arith.constant 0 : i32
    return %c0_i32, %c0_i32_0 : i32, i32
  }
  func.func @transform_3(%arg0: i32) -> (i32, i32) {
    %c0_i32 = arith.constant 0 : i32
    %c0_i32_0 = arith.constant 0 : i32
    %c0_i32_1 = arith.constant 0 : i32
    return %c0_i32, %c0_i32_0 : i32, i32
  }
  func.func @transform_4(%arg0: i32) -> (i32, i32) {
    %c0_i32 = arith.constant 0 : i32
    %c0_i32_0 = arith.constant 0 : i32
    %c0_i32_1 = arith.constant 0 : i32
    return %c0_i32, %c0_i32_0 : i32, i32
  }
  func.func @transform_5(%arg0: i32) -> (i32, i32) {
    %c0_i32 = arith.constant 0 : i32
    %c0_i32_0 = arith.constant 0 : i32
    %c0_i32_1 = arith.constant 0 : i32
    return %c0_i32, %c0_i32_0 : i32, i32
  }
  func.func @transform_6(%arg0: i32) -> (i32, i32) {
    %c0_i32 = arith.constant 0 : i32
    %c0_i32_0 = arith.constant 0 : i32
    %c0_i32_1 = arith.constant 0 : i32
    return %c0_i32, %c0_i32_0 : i32, i32
  }
  func.func @transform_7(%arg0: i32) -> (i32, i32) {
    %c0_i32 = arith.constant 0 : i32
    %c0_i32_0 = arith.constant 0 : i32
    %c0_i32_1 = arith.constant 0 : i32
    return %c0_i32, %c0_i32_0 : i32, i32
  }
  func.func @transform_8(%arg0: i32) -> (i32, i32) {
    %c0_i32 = arith.constant 0 : i32
    %c0_i32_0 = arith.constant 0 : i32
    %c0_i32_1 = arith.constant 0 : i32
    return %c0_i32, %c0_i32_0 : i32, i32
  }
  func.func @transform_9(%arg0: i32) -> (i32, i32) {
    %c0_i32 = arith.constant 0 : i32
    %c0_i32_0 = arith.constant 0 : i32
    return %arg0, %c0_i32 : i32, i32
  }
}

</mosaic_0001>

<llo_original>
// kernel: tpu_custom_call.1
$region0: #{tpu_custom_call.1}
  #allocation0 [shape = 'u32[]', space=smem, size = 0x4, offset = 0x4, fixed_abs, tag = 'smem constant byte address 0x4 - core index']
  #allocation1 [shape = 'u32[144,128]{1,0:T(1,128)}', space=vmem, size = 0x12000, scoped, tag = 'internal scratch']
  %s0 = inlined_call_operand.vmem [shape: f32[256,16], index: 0, kind: input, shape index: {}]
  %s1 = inlined_call_operand.vmem [shape: bf16[16,512], index: 1, kind: input, shape index: {}]
  %s2 = inlined_call_operand.vmem [shape: f32[1,512], index: 2, kind: input, shape index: {}]
  %s3 = inlined_call_operand.vmem [shape: bf16[512,128], index: 3, kind: input, shape index: {}]
  %s4 = inlined_call_operand.vmem [shape: f32[1,128], index: 4, kind: input, shape index: {}]
  %s5 = inlined_call_operand.hbm [shape: bf16[128,128], index: 5, kind: input, shape index: {}]
  %s6 = inlined_call_operand.vmem [shape: f32[1,128], index: 6, kind: input, shape index: {}]
  %s7 = inlined_call_operand.hbm [shape: bf16[128,128], index: 7, kind: input, shape index: {}]
  %s8 = inlined_call_operand.vmem [shape: f32[1,128], index: 8, kind: input, shape index: {}]
  %s9 = inlined_call_operand.hbm [shape: f32[256,128], index: 9, kind: output, shape index: {}]
  %s10 = sld [smem:[#allocation0]]
  $region54: #{tpu_custom_call.1} parent=0
    _
  %s12 = ssub.s32 1, %s10
  %s13 = scalar_select 0, %s12, %s10
  $region1: #{tpu_custom_call.1} parent=0
    #allocation2 [shape = 'u8[32768]{0}', space=vmem, size = 0x8000, scoped, tag = 'input window, operand 5, single buffered']
    #allocation3 [shape = 's32[1]{0}', space=sflag, size = 0x4, scoped, tag = 'scoped memory for tpu_custom_call.1']
    #allocation4 [shape = 's32[1]{0}', space=sflag, size = 0x4, scoped, tag = 'scoped memory for tpu_custom_call.1']
    #allocation5 [shape = 'u8[32768]{0}', space=vmem, size = 0x8000, scoped, tag = 'input window, operand 7, single buffered']
    #allocation6 [shape = 's32[1]{0}', space=sflag, size = 0x4, scoped, tag = 'scoped memory for tpu_custom_call.1']
    #allocation7 [shape = 'u8[131072]{0}', space=vmem, size = 0x20000, scoped, tag = 'output window, operand 0, single buffered']
    %14 = vsyncpa [#allocation3], 0
    %15 = vsyncpa [#allocation6], 0
    %16 = vsyncpa [#allocation4], 0
    // Predicated region
    $region2: #{tpu_custom_call.1} parent=1 // pred_check
      _
    $region3: #{tpu_custom_call.1} parent=1 // pred_check_branch
      %18 = sbr.rel (0) target = $region5
    $region4: #{tpu_custom_call.1} parent=1 // pred_region
      _
    $region5: #{tpu_custom_call.1} parent=1 // pred_fallthru
      _
    // Predicated region
    $region6: #{tpu_custom_call.1} parent=1 // pred_check
      _
    $region7: #{tpu_custom_call.1} parent=1 // pred_check_branch
      %20 = sbr.rel (0) target = $region9
    $region8: #{tpu_custom_call.1} parent=1 // pred_region
      _
    $region9: #{tpu_custom_call.1} parent=1 // pred_fallthru
      _
    // Predicated region
    $region10: #{tpu_custom_call.1} parent=1 // pred_check
      _
    $region11: #{tpu_custom_call.1} parent=1 // pred_check_branch
      %22 = sbr.rel (0) target = $region13
    $region12: #{tpu_custom_call.1} parent=1 // pred_region
      _
    $region13: #{tpu_custom_call.1} parent=1 // pred_fallthru
      _
    // Predicated region
    $region14: #{tpu_custom_call.1} parent=1 // pred_check
      _
    $region15: #{tpu_custom_call.1} parent=1 // pred_check_branch
      %24 = sbr.rel (0) target = $region17
    $region16: #{tpu_custom_call.1} parent=1 // pred_region
      _
    $region17: #{tpu_custom_call.1} parent=1 // pred_fallthru
      _
    // Predicated region
    $region18: #{tpu_custom_call.1} parent=1 // pred_check
      _
    $region19: #{tpu_custom_call.1} parent=1 // pred_check_branch
      %26 = sbr.rel (0) target = $region21
    $region20: #{tpu_custom_call.1} parent=1 // pred_region
      _
    $region21: #{tpu_custom_call.1} parent=1 // pred_fallthru
      _
    // Predicated region
    $region22: #{tpu_custom_call.1} parent=1 // pred_check
      _
    $region23: #{tpu_custom_call.1} parent=1 // pred_check_branch
      %28 = sbr.rel (0) target = $region25
    $region24: #{tpu_custom_call.1} parent=1 // pred_region
      %s30 = ssub.s32 1024, 1024
      %31 = vsyncadd [#allocation3], %s30
      %s32 = sshll.u32 [#allocation2], 4
      %s33 = int_to_ptr.vmem [resolvable:$true] %s32
      %38 = dma.hbm_to_vmem [thread:$0]  %s5, 1024, %s33, [#allocation3], 64, 64, 4
    $region25: #{tpu_custom_call.1} parent=1 // pred_fallthru
      _
    // Predicated region
    $region26: #{tpu_custom_call.1} parent=1 // pred_check
      _
    $region27: #{tpu_custom_call.1} parent=1 // pred_check_branch
      %40 = sbr.rel (0) target = $region29
    $region28: #{tpu_custom_call.1} parent=1 // pred_region
      _
    $region29: #{tpu_custom_call.1} parent=1 // pred_fallthru
      _
    // Predicated region
    $region30: #{tpu_custom_call.1} parent=1 // pred_check
      _
    $region31: #{tpu_custom_call.1} parent=1 // pred_check_branch
      %42 = sbr.rel (0) target = $region33
    $region32: #{tpu_custom_call.1} parent=1 // pred_region
      %s44 = ssub.s32 1024, 1024
      %45 = vsyncadd [#allocation6], %s44
      %s46 = sshll.u32 [#allocation5], 4
      %s47 = int_to_ptr.vmem [resolvable:$true] %s46
      %52 = dma.hbm_to_vmem [thread:$0]  %s7, 1024, %s47, [#allocation6], 64, 64, 4
    $region33: #{tpu_custom_call.1} parent=1 // pred_fallthru
      _
    // Predicated region
    $region34: #{tpu_custom_call.1} parent=1 // pred_check
      _
    $region35: #{tpu_custom_call.1} parent=1 // pred_check_branch
      %54 = sbr.rel (0) target = $region37
    $region36: #{tpu_custom_call.1} parent=1 // pred_region
      _
    $region37: #{tpu_custom_call.1} parent=1 // pred_fallthru
      _
    // Predicated region
    $region38: #{tpu_custom_call.1} parent=1 // pred_check
      _
    $region39: #{tpu_custom_call.1} parent=1 // pred_check_branch
      %56 = sbr.rel (0) target = $region41
    $region40: #{tpu_custom_call.1} parent=1 // pred_region
      %57 = dma.done [#allocation3], 1024
    $region41: #{tpu_custom_call.1} parent=1 // pred_fallthru
      _
    // Predicated region
    $region42: #{tpu_custom_call.1} parent=1 // pred_check
      _
    $region43: #{tpu_custom_call.1} parent=1 // pred_check_branch
      %59 = sbr.rel (0) target = $region45
    $region44: #{tpu_custom_call.1} parent=1 // pred_region
      %60 = dma.done [#allocation6], 1024
    $region45: #{tpu_custom_call.1} parent=1 // pred_fallthru
      _
    %v62 = vld [vmem:[%s0] sm:$0xff]
    %v63 = vld [vmem:[%s0 + $0x8] sm:$0xff]
    %v64 = vld [vmem:[%s0 + $0x10] sm:$0xff]
    %v65 = vld [vmem:[%s0 + $0x18] sm:$0xff]
    %v66 = vld [vmem:[%s0 + $0x20] sm:$0xff]
    %v67 = vld [vmem:[%s0 + $0x28] sm:$0xff]
    %v68 = vld [vmem:[%s0 + $0x30] sm:$0xff]
    %v69 = vld [vmem:[%s0 + $0x38] sm:$0xff]
    %v70 = vld [vmem:[%s0 + $0x40] sm:$0xff]
    %v71 = vld [vmem:[%s0 + $0x48] sm:$0xff]
    %v72 = vld [vmem:[%s0 + $0x50] sm:$0xff]
    %v73 = vld [vmem:[%s0 + $0x58] sm:$0xff]
    %v74 = vld [vmem:[%s0 + $0x60] sm:$0xff]
    %v75 = vld [vmem:[%s0 + $0x68] sm:$0xff]
    %v76 = vld [vmem:[%s0 + $0x70] sm:$0xff]
    %v77 = vld [vmem:[%s0 + $0x78] sm:$0xff]
    %v78 = vld [vmem:[%s0 + $0x80] sm:$0xff]
    %v79 = vld [vmem:[%s0 + $0x88] sm:$0xff]
    %v80 = vld [vmem:[%s0 + $0x90] sm:$0xff]
    %v81 = vld [vmem:[%s0 + $0x98] sm:$0xff]
    %v82 = vld [vmem:[%s0 + $0xa0] sm:$0xff]
    %v83 = vld [vmem:[%s0 + $0xa8] sm:$0xff]
    %v84 = vld [vmem:[%s0 + $0xb0] sm:$0xff]
    %v85 = vld [vmem:[%s0 + $0xb8] sm:$0xff]
    %v86 = vld [vmem:[%s0 + $0xc0] sm:$0xff]
    %v87 = vld [vmem:[%s0 + $0xc8] sm:$0xff]
    %v88 = vld [vmem:[%s0 + $0xd0] sm:$0xff]
    %v89 = vld [vmem:[%s0 + $0xd8] sm:$0xff]
    %v90 = vld [vmem:[%s0 + $0xe0] sm:$0xff]
    %v91 = vld [vmem:[%s0 + $0xe8] sm:$0xff]
    %v92 = vld [vmem:[%s0 + $0xf0] sm:$0xff]
    %v93 = vld [vmem:[%s0 + $0xf8] sm:$0xff]
    %v94 = vpack.c.bf16 %v63, %v62
    %v95 = vpack.c.bf16 %v65, %v64
    %v96 = vpack.c.bf16 %v67, %v66
    %v97 = vpack.c.bf16 %v69, %v68
    %v98 = vpack.c.bf16 %v71, %v70
    %v99 = vpack.c.bf16 %v73, %v72
    %v100 = vpack.c.bf16 %v75, %v74
    %v101 = vpack.c.bf16 %v77, %v76
    %v102 = vpack.c.bf16 %v79, %v78
    %v103 = vpack.c.bf16 %v81, %v80
    %v104 = vpack.c.bf16 %v83, %v82
    %v105 = vpack.c.bf16 %v85, %v84
    %v106 = vpack.c.bf16 %v87, %v86
    %v107 = vpack.c.bf16 %v89, %v88
    %v108 = vpack.c.bf16 %v91, %v90
    %v109 = vpack.c.bf16 %v93, %v92
    %v110 = vld [vmem:[%s1] sm:$0xff]
    %v111 = vld [vmem:[%s1 + $0x8] sm:$0xff]
    %v112 = vld [vmem:[%s1 + $0x10] sm:$0xff]
    %v113 = vld [vmem:[%s1 + $0x18] sm:$0xff]
    %v114 = vld [vmem:[%s2] sm:$0xf]
    %v116 = vlaneseq
    %v117 = vshrl.u32 %v116, 7
    %v118 = vsub.s32 0, %v117
    %v119 = vrot.slane %v114, %v118
    %v120 = vlaneseq
    %v121 = vshrl.u32 %v120, 7
    %v122 = vsub.s32 1, %v121
    %v123 = vrot.slane %v114, %v122
    %v124 = vlaneseq
    %v125 = vshrl.u32 %v124, 7
    %v126 = vsub.s32 2, %v125
    %v127 = vrot.slane %v114, %v126
    %v128 = vlaneseq
    %v129 = vshrl.u32 %v128, 7
    %v130 = vsub.s32 3, %v129
    %v131 = vrot.slane %v114, %v130
    %v140 = vunpack.c.l.b16 %v110
    %v141 = vunpack.c.h.b16 %v110
    %v142 = vunpack.c.l.b16 %v111
    %v143 = vunpack.c.h.b16 %v111
    %v144 = vunpack.c.l.b16 %v112
    %v145 = vunpack.c.h.b16 %v112
    %v146 = vunpack.c.l.b16 %v113
    %v147 = vunpack.c.h.b16 %v113
    %v148 = vpack.c.b16 %v144, %v140
    %v149 = vpack.c.b16 %v145, %v141
    %v150 = vpack.c.b16 %v146, %v142
    %v151 = vpack.c.b16 %v147, %v143
    %vm156 = vcmask 130048
    %v158 = vsel %vm156, %v94, 0
    %v161 = vsel %vm156, %v95, 0
    %v164 = vsel %vm156, %v96, 0
    %v167 = vsel %vm156, %v97, 0
    %v170 = vsel %vm156, %v98, 0
    %v173 = vsel %vm156, %v99, 0
    %v176 = vsel %vm156, %v100, 0
    %v179 = vsel %vm156, %v101, 0
    %v182 = vsel %vm156, %v102, 0
    %v185 = vsel %vm156, %v103, 0
    %v188 = vsel %vm156, %v104, 0
    %v191 = vsel %vm156, %v105, 0
    %v194 = vsel %vm156, %v106, 0
    %v197 = vsel %vm156, %v107, 0
    %v200 = vsel %vm156, %v108, 0
    %v203 = vsel %vm156, %v109, 0
    %205 = vmatprep.subr.bf16.mxu0 %v149
    %206 = vmatpush1.bf16.msra.mxu0 %v148
    %207 = vmatprep.subr.bf16.mxu0 0
    %208 = vmatpush1.bf16.msra.mxu0 0
    %209 = vmatprep.subr.bf16.mxu0 0
    %210 = vmatpush1.bf16.msra.mxu0 0
    %211 = vmatprep.subr.bf16.mxu0 0
    %212 = vmatpush1.bf16.msra.mxu0 0
    %213 = vmatprep.subr.bf16.mxu0 0
    %214 = vmatpush1.bf16.msra.mxu0 0
    %215 = vmatprep.subr.bf16.mxu0 0
    %216 = vmatpush1.bf16.msra.mxu0 0
    %217 = vmatprep.subr.bf16.mxu0 0
    %218 = vmatpush1.bf16.msra.mxu0 0
    %219 = vmatprep.subr.bf16.mxu0 0
    %220 = vmatpush1.bf16.msra.mxu0 0
    %221 = vmatprep.subr.bf16.mxu0 0
    %222 = vmatpush1.bf16.msra.mxu0 0
    %223 = vmatprep.subr.bf16.mxu0 0
    %224 = vmatpush1.bf16.msra.mxu0 0
    %225 = vmatprep.subr.bf16.mxu0 0
    %226 = vmatpush1.bf16.msra.mxu0 0
    %227 = vmatprep.subr.bf16.mxu0 0
    %228 = vmatpush1.bf16.msra.mxu0 0
    %229 = vmatprep.subr.bf16.mxu0 0
    %230 = vmatpush1.bf16.msra.mxu0 0
    %231 = vmatprep.subr.bf16.mxu0 0
    %232 = vmatpush1.bf16.msra.mxu0 0
    %233 = vmatprep.subr.bf16.mxu0 0
    %234 = vmatpush1.bf16.msra.mxu0 0
    %235 = vmatprep.subr.bf16.mxu0 0
    %236 = vmatpush1.bf16.msra.mxu0 0
    %237 = vmatprep.mubr.bf16.mxu0 0
    %238 = vmatmul.mubr.bf16.gmra.mrb[0].mxu0 %v158
    %v239 = vpop.f32.mrb[0].mxu0
    %v240 = vadd.f32 %v119, %v239
    %v241 = vpop.f32.mrb[0].mxu0
    %v242 = vadd.f32 %v123, %v241
    %v243 = vpop.f32.mrb[0].mxu0
    %v244 = vadd.f32 %v119, %v243
    %v245 = vpop.f32.mrb[0].mxu0
    %v246 = vadd.f32 %v123, %v245
    %247 = vmatprep.mubr.bf16.mxu0 0
    %248 = vmatmul.mubr.bf16.gmra.mrb[0].mxu0 %v161
    %v249 = vpop.f32.mrb[0].mxu0
    %v250 = vadd.f32 %v119, %v249
    %v251 = vpop.f32.mrb[0].mxu0
    %v252 = vadd.f32 %v123, %v251
    %v253 = vpop.f32.mrb[0].mxu0
    %v254 = vadd.f32 %v119, %v253
    %v255 = vpop.f32.mrb[0].mxu0
    %v256 = vadd.f32 %v123, %v255
    %257 = vmatprep.mubr.bf16.mxu0 0
    %258 = vmatmul.mubr.bf16.gmra.mrb[0].mxu0 %v164
    %v259 = vpop.f32.mrb[0].mxu0
    %v260 = vadd.f32 %v119, %v259
    %v261 = vpop.f32.mrb[0].mxu0
    %v262 = vadd.f32 %v123, %v261
    %v263 = vpop.f32.mrb[0].mxu0
    %v264 = vadd.f32 %v119, %v263
    %v265 = vpop.f32.mrb[0].mxu0
    %v266 = vadd.f32 %v123, %v265
    %267 = vmatprep.mubr.bf16.mxu0 0
    %268 = vmatmul.mubr.bf16.gmra.mrb[0].mxu0 %v167
    %v269 = vpop.f32.mrb[0].mxu0
    %v270 = vadd.f32 %v119, %v269
    %v271 = vpop.f32.mrb[0].mxu0
    %v272 = vadd.f32 %v123, %v271
    %v273 = vpop.f32.mrb[0].mxu0
    %v274 = vadd.f32 %v119, %v273
    %v275 = vpop.f32.mrb[0].mxu0
    %v276 = vadd.f32 %v123, %v275
    %277 = vmatprep.mubr.bf16.mxu0 0
    %278 = vmatmul.mubr.bf16.gmra.mrb[0].mxu0 %v170
    %v279 = vpop.f32.mrb[0].mxu0
    %v280 = vadd.f32 %v119, %v279
    %v281 = vpop.f32.mrb[0].mxu0
    %v282 = vadd.f32 %v123, %v281
    %v283 = vpop.f32.mrb[0].mxu0
    %v284 = vadd.f32 %v119, %v283
    %v285 = vpop.f32.mrb[0].mxu0
    %v286 = vadd.f32 %v123, %v285
    %287 = vmatprep.mubr.bf16.mxu0 0
    %288 = vmatmul.mubr.bf16.gmra.mrb[0].mxu0 %v173
    %v289 = vpop.f32.mrb[0].mxu0
    %v290 = vadd.f32 %v119, %v289
    %v291 = vpop.f32.mrb[0].mxu0
    %v292 = vadd.f32 %v123, %v291
    %v293 = vpop.f32.mrb[0].mxu0
    %v294 = vadd.f32 %v119, %v293
    %v295 = vpop.f32.mrb[0].mxu0
    %v296 = vadd.f32 %v123, %v295
    %297 = vmatprep.mubr.bf16.mxu0 0
    %298 = vmatmul.mubr.bf16.gmra.mrb[0].mxu0 %v176
    %v299 = vpop.f32.mrb[0].mxu0
    %v300 = vadd.f32 %v119, %v299
    %v301 = vpop.f32.mrb[0].mxu0
    %v302 = vadd.f32 %v123, %v301
    %v303 = vpop.f32.mrb[0].mxu0
    %v304 = vadd.f32 %v119, %v303
    %v305 = vpop.f32.mrb[0].mxu0
    %v306 = vadd.f32 %v123, %v305
    %307 = vmatprep.mubr.bf16.mxu0 0
    %308 = vmatmul.mubr.bf16.gmra.mrb[0].mxu0 %v179
    %v309 = vpop.f32.mrb[0].mxu0
    %v310 = vadd.f32 %v119, %v309
    %v311 = vpop.f32.mrb[0].mxu0
    %v312 = vadd.f32 %v123, %v311
    %v313 = vpop.f32.mrb[0].mxu0
    %v314 = vadd.f32 %v119, %v313
    %v315 = vpop.f32.mrb[0].mxu0
    %v316 = vadd.f32 %v123, %v315
    %317 = vmatprep.mubr.bf16.mxu0 0
    %318 = vmatmul.mubr.bf16.gmra.mrb[0].mxu0 %v182
    %v319 = vpop.f32.mrb[0].mxu0
    %v320 = vadd.f32 %v119, %v319
    %v321 = vpop.f32.mrb[0].mxu0
    %v322 = vadd.f32 %v123, %v321
    %v323 = vpop.f32.mrb[0].mxu0
    %v324 = vadd.f32 %v119, %v323
    %v325 = vpop.f32.mrb[0].mxu0
    %v326 = vadd.f32 %v123, %v325
    %327 = vmatprep.mubr.bf16.mxu0 0
    %328 = vmatmul.mubr.bf16.gmra.mrb[0].mxu0 %v185
    %v329 = vpop.f32.mrb[0].mxu0
    %v330 = vadd.f32 %v119, %v329
    %v331 = vpop.f32.mrb[0].mxu0
    %v332 = vadd.f32 %v123, %v331
    %v333 = vpop.f32.mrb[0].mxu0
    %v334 = vadd.f32 %v119, %v333
    %v335 = vpop.f32.mrb[0].mxu0
    %v336 = vadd.f32 %v123, %v335
    %337 = vmatprep.mubr.bf16.mxu0 0
    %338 = vmatmul.mubr.bf16.gmra.mrb[0].mxu0 %v188
    %v339 = vpop.f32.mrb[0].mxu0
    %v340 = vadd.f32 %v119, %v339
    %v341 = vpop.f32.mrb[0].mxu0
    %v342 = vadd.f32 %v123, %v341
    %v343 = vpop.f32.mrb[0].mxu0
    %v344 = vadd.f32 %v119, %v343
    %v345 = vpop.f32.mrb[0].mxu0
    %v346 = vadd.f32 %v123, %v345
    %347 = vmatprep.mubr.bf16.mxu0 0
    %348 = vmatmul.mubr.bf16.gmra.mrb[0].mxu0 %v191
    %v349 = vpop.f32.mrb[0].mxu0
    %v350 = vadd.f32 %v119, %v349
    %v351 = vpop.f32.mrb[0].mxu0
    %v352 = vadd.f32 %v123, %v351
    %v353 = vpop.f32.mrb[0].mxu0
    %v354 = vadd.f32 %v119, %v353
    %v355 = vpop.f32.mrb[0].mxu0
    %v356 = vadd.f32 %v123, %v355
    %357 = vmatprep.mubr.bf16.mxu0 0
    %358 = vmatmul.mubr.bf16.gmra.mrb[0].mxu0 %v194
    %v359 = vpop.f32.mrb[0].mxu0
    %v360 = vadd.f32 %v119, %v359
    %v361 = vpop.f32.mrb[0].mxu0
    %v362 = vadd.f32 %v123, %v361
    %v363 = vpop.f32.mrb[0].mxu0
    %v364 = vadd.f32 %v119, %v363
    %v365 = vpop.f32.mrb[0].mxu0
    %v366 = vadd.f32 %v123, %v365
    %367 = vmatprep.mubr.bf16.mxu0 0
    %368 = vmatmul.mubr.bf16.gmra.mrb[0].mxu0 %v197
    %v369 = vpop.f32.mrb[0].mxu0
    %v370 = vadd.f32 %v119, %v369
    %v371 = vpop.f32.mrb[0].mxu0
    %v372 = vadd.f32 %v123, %v371
    %v373 = vpop.f32.mrb[0].mxu0
    %v374 = vadd.f32 %v119, %v373
    %v375 = vpop.f32.mrb[0].mxu0
    %v376 = vadd.f32 %v123, %v375
    %377 = vmatprep.mubr.bf16.mxu0 0
    %378 = vmatmul.mubr.bf16.gmra.mrb[0].mxu0 %v200
    %v379 = vpop.f32.mrb[0].mxu0
    %v380 = vadd.f32 %v119, %v379
    %v381 = vpop.f32.mrb[0].mxu0
    %v382 = vadd.f32 %v123, %v381
    %v383 = vpop.f32.mrb[0].mxu0
    %v384 = vadd.f32 %v119, %v383
    %v385 = vpop.f32.mrb[0].mxu0
    %v386 = vadd.f32 %v123, %v385
    %387 = vmatprep.mubr.bf16.mxu0 0
    %388 = vmatmul.mubr.bf16.gmra.mrb[0].mxu0 %v203
    %v389 = vpop.f32.mrb[0].mxu0
    %v390 = vadd.f32 %v119, %v389
    %v391 = vpop.f32.mrb[0].mxu0
    %v392 = vadd.f32 %v123, %v391
    %v393 = vpop.f32.mrb[0].mxu0
    %v394 = vadd.f32 %v119, %v393
    %v395 = vpop.f32.mrb[0].mxu0
    %v396 = vadd.f32 %v123, %v395
    %397 = vdwg.mxu0
    %398 = vmatprep.subr.bf16.mxu0 %v151
    %399 = vmatpush1.bf16.msra.mxu0 %v150
    %400 = vmatprep.subr.bf16.mxu0 0
    %401 = vmatpush1.bf16.msra.mxu0 0
    %402 = vmatprep.subr.bf16.mxu0 0
    %403 = vmatpush1.bf16.msra.mxu0 0
    %404 = vmatprep.subr.bf16.mxu0 0
    %405 = vmatpush1.bf16.msra.mxu0 0
    %406 = vmatprep.subr.bf16.mxu0 0
    %407 = vmatpush1.bf16.msra.mxu0 0
    %408 = vmatprep.subr.bf16.mxu0 0
    %409 = vmatpush1.bf16.msra.mxu0 0
    %410 = vmatprep.subr.bf16.mxu0 0
    %411 = vmatpush1.bf16.msra.mxu0 0
    %412 = vmatprep.subr.bf16.mxu0 0
    %413 = vmatpush1.bf16.msra.mxu0 0
    %414 = vmatprep.subr.bf16.mxu0 0
    %415 = vmatpush1.bf16.msra.mxu0 0
    %416 = vmatprep.subr.bf16.mxu0 0
    %417 = vmatpush1.bf16.msra.mxu0 0
    %418 = vmatprep.subr.bf16.mxu0 0
    %419 = vmatpush1.bf16.msra.mxu0 0
    %420 = vmatprep.subr.bf16.mxu0 0
    %421 = vmatpush1.bf16.msra.mxu0 0
    %422 = vmatprep.subr.bf16.mxu0 0
    %423 = vmatpush1.bf16.msra.mxu0 0
    %424 = vmatprep.subr.bf16.mxu0 0
    %425 = vmatpush1.bf16.msra.mxu0 0
    %426 = vmatprep.subr.bf16.mxu0 0
    %427 = vmatpush1.bf16.msra.mxu0 0
    %428 = vmatprep.subr.bf16.mxu0 0
    %429 = vmatpush1.bf16.msra.mxu0 0
    %430 = vmatprep.mubr.bf16.mxu0 0
    %431 = vmatmul.mubr.bf16.gmra.mrb[0].mxu0 %v158
    %v432 = vpop.f32.mrb[0].mxu0
    %v433 = vadd.f32 %v127, %v432
    %v434 = vpop.f32.mrb[0].mxu0
    %v435 = vadd.f32 %v131, %v434
    %v436 = vpop.f32.mrb[0].mxu0
    %v437 = vadd.f32 %v127, %v436
    %v438 = vpop.f32.mrb[0].mxu0
    %v439 = vadd.f32 %v131, %v438
    %440 = vmatprep.mubr.bf16.mxu0 0
    %441 = vmatmul.mubr.bf16.gmra.mrb[0].mxu0 %v161
    %v442 = vpop.f32.mrb[0].mxu0
    %v443 = vadd.f32 %v127, %v442
    %v444 = vpop.f32.mrb[0].mxu0
    %v445 = vadd.f32 %v131, %v444
    %v446 = vpop.f32.mrb[0].mxu0
    %v447 = vadd.f32 %v127, %v446
    %v448 = vpop.f32.mrb[0].mxu0
    %v449 = vadd.f32 %v131, %v448
    %450 = vmatprep.mubr.bf16.mxu0 0
    %451 = vmatmul.mubr.bf16.gmra.mrb[0].mxu0 %v164
    %v452 = vpop.f32.mrb[0].mxu0
    %v453 = vadd.f32 %v127, %v452
    %v454 = vpop.f32.mrb[0].mxu0
    %v455 = vadd.f32 %v131, %v454
    %v456 = vpop.f32.mrb[0].mxu0
    %v457 = vadd.f32 %v127, %v456
    %v458 = vpop.f32.mrb[0].mxu0
    %v459 = vadd.f32 %v131, %v458
    %460 = vmatprep.mubr.bf16.mxu0 0
    %461 = vmatmul.mubr.bf16.gmra.mrb[0].mxu0 %v167
    %v462 = vpop.f32.mrb[0].mxu0
    %v463 = vadd.f32 %v127, %v462
    %v464 = vpop.f32.mrb[0].mxu0
    %v465 = vadd.f32 %v131, %v464
    %v466 = vpop.f32.mrb[0].mxu0
    %v467 = vadd.f32 %v127, %v466
    %v468 = vpop.f32.mrb[0].mxu0
    %v469 = vadd.f32 %v131, %v468
    %470 = vmatprep.mubr.bf16.mxu0 0
    %471 = vmatmul.mubr.bf16.gmra.mrb[0].mxu0 %v170
    %v472 = vpop.f32.mrb[0].mxu0
    %v473 = vadd.f32 %v127, %v472
    %v474 = vpop.f32.mrb[0].mxu0
    %v475 = vadd.f32 %v131, %v474
    %v476 = vpop.f32.mrb[0].mxu0
    %v477 = vadd.f32 %v127, %v476
    %v478 = vpop.f32.mrb[0].mxu0
    %v479 = vadd.f32 %v131, %v478
    %480 = vmatprep.mubr.bf16.mxu0 0
    %481 = vmatmul.mubr.bf16.gmra.mrb[0].mxu0 %v173
    %v482 = vpop.f32.mrb[0].mxu0
    %v483 = vadd.f32 %v127, %v482
    %v484 = vpop.f32.mrb[0].mxu0
    %v485 = vadd.f32 %v131, %v484
    %v486 = vpop.f32.mrb[0].mxu0
    %v487 = vadd.f32 %v127, %v486
    %v488 = vpop.f32.mrb[0].mxu0
    %v489 = vadd.f32 %v131, %v488
    %490 = vmatprep.mubr.bf16.mxu0 0
    %491 = vmatmul.mubr.bf16.gmra.mrb[0].mxu0 %v176
    %v492 = vpop.f32.mrb[0].mxu0
    %v493 = vadd.f32 %v127, %v492
    %v494 = vpop.f32.mrb[0].mxu0
    %v495 = vadd.f32 %v131, %v494
    %v496 = vpop.f32.mrb[0].mxu0
    %v497 = vadd.f32 %v127, %v496
    %v498 = vpop.f32.mrb[0].mxu0
    %v499 = vadd.f32 %v131, %v498
    %500 = vmatprep.mubr.bf16.mxu0 0
    %501 = vmatmul.mubr.bf16.gmra.mrb[0].mxu0 %v179
    %v502 = vpop.f32.mrb[0].mxu0
    %v503 = vadd.f32 %v127, %v502
    %v504 = vpop.f32.mrb[0].mxu0
    %v505 = vadd.f32 %v131, %v504
    %v506 = vpop.f32.mrb[0].mxu0
    %v507 = vadd.f32 %v127, %v506
    %v508 = vpop.f32.mrb[0].mxu0
    %v509 = vadd.f32 %v131, %v508
    %510 = vmatprep.mubr.bf16.mxu0 0
    %511 = vmatmul.mubr.bf16.gmra.mrb[0].mxu0 %v182
    %v512 = vpop.f32.mrb[0].mxu0
    %v513 = vadd.f32 %v127, %v512
    %v514 = vpop.f32.mrb[0].mxu0
    %v515 = vadd.f32 %v131, %v514
    %v516 = vpop.f32.mrb[0].mxu0
    %v517 = vadd.f32 %v127, %v516
    %v518 = vpop.f32.mrb[0].mxu0
    %v519 = vadd.f32 %v131, %v518
    %520 = vmatprep.mubr.bf16.mxu0 0
    %521 = vmatmul.mubr.bf16.gmra.mrb[0].mxu0 %v185
    %v522 = vpop.f32.mrb[0].mxu0
    %v523 = vadd.f32 %v127, %v522
    %v524 = vpop.f32.mrb[0].mxu0
    %v525 = vadd.f32 %v131, %v524
    %v526 = vpop.f32.mrb[0].mxu0
    %v527 = vadd.f32 %v127, %v526
    %v528 = vpop.f32.mrb[0].mxu0
    %v529 = vadd.f32 %v131, %v528
    %530 = vmatprep.mubr.bf16.mxu0 0
    %531 = vmatmul.mubr.bf16.gmra.mrb[0].mxu0 %v188
    %v532 = vpop.f32.mrb[0].mxu0
    %v533 = vadd.f32 %v127, %v532
    %v534 = vpop.f32.mrb[0].mxu0
    %v535 = vadd.f32 %v131, %v534
    %v536 = vpop.f32.mrb[0].mxu0
    %v537 = vadd.f32 %v127, %v536
    %v538 = vpop.f32.mrb[0].mxu0
    %v539 = vadd.f32 %v131, %v538
    %540 = vmatprep.mubr.bf16.mxu0 0
    %541 = vmatmul.mubr.bf16.gmra.mrb[0].mxu0 %v191
    %v542 = vpop.f32.mrb[0].mxu0
    %v543 = vadd.f32 %v127, %v542
    %v544 = vpop.f32.mrb[0].mxu0
    %v545 = vadd.f32 %v131, %v544
    %v546 = vpop.f32.mrb[0].mxu0
    %v547 = vadd.f32 %v127, %v546
    %v548 = vpop.f32.mrb[0].mxu0
    %v549 = vadd.f32 %v131, %v548
    %550 = vmatprep.mubr.bf16.mxu0 0
    %551 = vmatmul.mubr.bf16.gmra.mrb[0].mxu0 %v194
    %v552 = vpop.f32.mrb[0].mxu0
    %v553 = vadd.f32 %v127, %v552
    %v554 = vpop.f32.mrb[0].mxu0
    %v555 = vadd.f32 %v131, %v554
    %v556 = vpop.f32.mrb[0].mxu0
    %v557 = vadd.f32 %v127, %v556
    %v558 = vpop.f32.mrb[0].mxu0
    %v559 = vadd.f32 %v131, %v558
    %560 = vmatprep.mubr.bf16.mxu0 0
    %561 = vmatmul.mubr.bf16.gmra.mrb[0].mxu0 %v197
    %v562 = vpop.f32.mrb[0].mxu0
    %v563 = vadd.f32 %v127, %v562
    %v564 = vpop.f32.mrb[0].mxu0
    %v565 = vadd.f32 %v131, %v564
    %v566 = vpop.f32.mrb[0].mxu0
    %v567 = vadd.f32 %v127, %v566
    %v568 = vpop.f32.mrb[0].mxu0
    %v569 = vadd.f32 %v131, %v568
    %570 = vmatprep.mubr.bf16.mxu0 0
    %571 = vmatmul.mubr.bf16.gmra.mrb[0].mxu0 %v200
    %v572 = vpop.f32.mrb[0].mxu0
    %v573 = vadd.f32 %v127, %v572
    %v574 = vpop.f32.mrb[0].mxu0
    %v575 = vadd.f32 %v131, %v574
    %v576 = vpop.f32.mrb[0].mxu0
    %v577 = vadd.f32 %v127, %v576
    %v578 = vpop.f32.mrb[0].mxu0
    %v579 = vadd.f32 %v131, %v578
    %580 = vmatprep.mubr.bf16.mxu0 0
    %581 = vmatmul.mubr.bf16.gmra.mrb[0].mxu0 %v203
    %v582 = vpop.f32.mrb[0].mxu0
    %v583 = vadd.f32 %v127, %v582
    %v584 = vpop.f32.mrb[0].mxu0
    %v585 = vadd.f32 %v131, %v584
    %v586 = vpop.f32.mrb[0].mxu0
    %v587 = vadd.f32 %v127, %v586
    %v588 = vpop.f32.mrb[0].mxu0
    %v589 = vadd.f32 %v131, %v588
    %590 = vdwg.mxu0
    %v591 = vmax.f32 %v240, 0.0
    %v592 = vmax.f32 %v242, 0.0
    %v593 = vmax.f32 %v433, 0.0
    %v594 = vmax.f32 %v435, 0.0
    %v595 = vmax.f32 %v244, 0.0
    %v596 = vmax.f32 %v246, 0.0
    %v597 = vmax.f32 %v437, 0.0
    %v598 = vmax.f32 %v439, 0.0
    %v599 = vmax.f32 %v250, 0.0
    %v600 = vmax.f32 %v252, 0.0
    %v601 = vmax.f32 %v443, 0.0
    %v602 = vmax.f32 %v445, 0.0
    %v603 = vmax.f32 %v254, 0.0
    %v604 = vmax.f32 %v256, 0.0
    %v605 = vmax.f32 %v447, 0.0
    %v606 = vmax.f32 %v449, 0.0
    %v607 = vmax.f32 %v260, 0.0
    %v608 = vmax.f32 %v262, 0.0
    %v609 = vmax.f32 %v453, 0.0
    %v610 = vmax.f32 %v455, 0.0
    %v611 = vmax.f32 %v264, 0.0
    %v612 = vmax.f32 %v266, 0.0
    %v613 = vmax.f32 %v457, 0.0
    %v614 = vmax.f32 %v459, 0.0
    %v615 = vmax.f32 %v270, 0.0
    %v616 = vmax.f32 %v272, 0.0
    %v617 = vmax.f32 %v463, 0.0
    %v618 = vmax.f32 %v465, 0.0
    %v619 = vmax.f32 %v274, 0.0
    %v620 = vmax.f32 %v276, 0.0
    %v621 = vmax.f32 %v467, 0.0
    %v622 = vmax.f32 %v469, 0.0
    %v623 = vmax.f32 %v280, 0.0
    %v624 = vmax.f32 %v282, 0.0
    %v625 = vmax.f32 %v473, 0.0
    %v626 = vmax.f32 %v475, 0.0
    %v627 = vmax.f32 %v284, 0.0
    %v628 = vmax.f32 %v286, 0.0
    %v629 = vmax.f32 %v477, 0.0
    %v630 = vmax.f32 %v479, 0.0
    %v631 = vmax.f32 %v290, 0.0
    %v632 = vmax.f32 %v292, 0.0
    %v633 = vmax.f32 %v483, 0.0
    %v634 = vmax.f32 %v485, 0.0
    %v635 = vmax.f32 %v294, 0.0
    %v636 = vmax.f32 %v296, 0.0
    %v637 = vmax.f32 %v487, 0.0
    %v638 = vmax.f32 %v489, 0.0
    %v639 = vmax.f32 %v300, 0.0
    %v640 = vmax.f32 %v302, 0.0
    %v641 = vmax.f32 %v493, 0.0
    %v642 = vmax.f32 %v495, 0.0
    %v643 = vmax.f32 %v304, 0.0
    %v644 = vmax.f32 %v306, 0.0
    %v645 = vmax.f32 %v497, 0.0
    %v646 = vmax.f32 %v499, 0.0
    %v647 = vmax.f32 %v310, 0.0
    %v648 = vmax.f32 %v312, 0.0
    %v649 = vmax.f32 %v503, 0.0
    %v650 = vmax.f32 %v505, 0.0
    %v651 = vmax.f32 %v314, 0.0
    %v652 = vmax.f32 %v316, 0.0
    %v653 = vmax.f32 %v507, 0.0
    %v654 = vmax.f32 %v509, 0.0
    %v655 = vmax.f32 %v320, 0.0
    %v656 = vmax.f32 %v322, 0.0
    %v657 = vmax.f32 %v513, 0.0
    %v658 = vmax.f32 %v515, 0.0
    %v659 = vmax.f32 %v324, 0.0
    %v660 = vmax.f32 %v326, 0.0
    %v661 = vmax.f32 %v517, 0.0
    %v662 = vmax.f32 %v519, 0.0
    %v663 = vmax.f32 %v330, 0.0
    %v664 = vmax.f32 %v332, 0.0
    %v665 = vmax.f32 %v523, 0.0
    %v666 = vmax.f32 %v525, 0.0
    %v667 = vmax.f32 %v334, 0.0
    %v668 = vmax.f32 %v336, 0.0
    %v669 = vmax.f32 %v527, 0.0
    %v670 = vmax.f32 %v529, 0.0
    %v671 = vmax.f32 %v340, 0.0
    %v672 = vmax.f32 %v342, 0.0
    %v673 = vmax.f32 %v533, 0.0
    %v674 = vmax.f32 %v535, 0.0
    %v675 = vmax.f32 %v344, 0.0
    %v676 = vmax.f32 %v346, 0.0
    %v677 = vmax.f32 %v537, 0.0
    %v678 = vmax.f32 %v539, 0.0
    %v679 = vmax.f32 %v350, 0.0
    %v680 = vmax.f32 %v352, 0.0
    %v681 = vmax.f32 %v543, 0.0
    %v682 = vmax.f32 %v545, 0.0
    %v683 = vmax.f32 %v354, 0.0
    %v684 = vmax.f32 %v356, 0.0
    %v685 = vmax.f32 %v547, 0.0
    %v686 = vmax.f32 %v549, 0.0
    %v687 = vmax.f32 %v360, 0.0
    %v688 = vmax.f32 %v362, 0.0
    %v689 = vmax.f32 %v553, 0.0
    %v690 = vmax.f32 %v555, 0.0
    %v691 = vmax.f32 %v364, 0.0
    %v692 = vmax.f32 %v366, 0.0
    %v693 = vmax.f32 %v557, 0.0
    %v694 = vmax.f32 %v559, 0.0
    %v695 = vmax.f32 %v370, 0.0
    %v696 = vmax.f32 %v372, 0.0
    %v697 = vmax.f32 %v563, 0.0
    %v698 = vmax.f32 %v565, 0.0
    %v699 = vmax.f32 %v374, 0.0
    %v700 = vmax.f32 %v376, 0.0
    %v701 = vmax.f32 %v567, 0.0
    %v702 = vmax.f32 %v569, 0.0
    %v703 = vmax.f32 %v380, 0.0
    %v704 = vmax.f32 %v382, 0.0
    %v705 = vmax.f32 %v573, 0.0
    %v706 = vmax.f32 %v575, 0.0
    %v707 = vmax.f32 %v384, 0.0
    %v708 = vmax.f32 %v386, 0.0
    %v709 = vmax.f32 %v577, 0.0
    %v710 = vmax.f32 %v579, 0.0
    %v711 = vmax.f32 %v390, 0.0
    %v712 = vmax.f32 %v392, 0.0
    %v713 = vmax.f32 %v583, 0.0
    %v714 = vmax.f32 %v585, 0.0
    %v715 = vmax.f32 %v394, 0.0
    %v716 = vmax.f32 %v396, 0.0
    %v717 = vmax.f32 %v587, 0.0
    %v718 = vmax.f32 %v589, 0.0
    %v719 = vpack.c.bf16 %v595, %v591
    %v720 = vpack.c.bf16 %v596, %v592
    %v721 = vpack.c.bf16 %v597, %v593
    %v722 = vpack.c.bf16 %v598, %v594
    %v723 = vpack.c.bf16 %v603, %v599
    %v724 = vpack.c.bf16 %v604, %v600
    %v725 = vpack.c.bf16 %v605, %v601
    %v726 = vpack.c.bf16 %v606, %v602
    %v727 = vpack.c.bf16 %v611, %v607
    %v728 = vpack.c.bf16 %v612, %v608
    %v729 = vpack.c.bf16 %v613, %v609
    %v730 = vpack.c.bf16 %v614, %v610
    %v731 = vpack.c.bf16 %v619, %v615
    %v732 = vpack.c.bf16 %v620, %v616
    %v733 = vpack.c.bf16 %v621, %v617
    %v734 = vpack.c.bf16 %v622, %v618
    %v735 = vpack.c.bf16 %v627, %v623
    %v736 = vpack.c.bf16 %v628, %v624
    %v737 = vpack.c.bf16 %v629, %v625
    %v738 = vpack.c.bf16 %v630, %v626
    %v739 = vpack.c.bf16 %v635, %v631
    %v740 = vpack.c.bf16 %v636, %v632
    %v741 = vpack.c.bf16 %v637, %v633
    %v742 = vpack.c.bf16 %v638, %v634
    %v743 = vpack.c.bf16 %v643, %v639
    %v744 = vpack.c.bf16 %v644, %v640
    %v745 = vpack.c.bf16 %v645, %v641
    %v746 = vpack.c.bf16 %v646, %v642
    %v747 = vpack.c.bf16 %v651, %v647
    %v748 = vpack.c.bf16 %v652, %v648
    %v749 = vpack.c.bf16 %v653, %v649
    %v750 = vpack.c.bf16 %v654, %v650
    %v751 = vpack.c.bf16 %v659, %v655
    %v752 = vpack.c.bf16 %v660, %v656
    %v753 = vpack.c.bf16 %v661, %v657
    %v754 = vpack.c.bf16 %v662, %v658
    %v755 = vpack.c.bf16 %v667, %v663
    %v756 = vpack.c.bf16 %v668, %v664
    %v757 = vpack.c.bf16 %v669, %v665
    %v758 = vpack.c.bf16 %v670, %v666
    %v759 = vpack.c.bf16 %v675, %v671
    %v760 = vpack.c.bf16 %v676, %v672
    %v761 = vpack.c.bf16 %v677, %v673
    %v762 = vpack.c.bf16 %v678, %v674
    %v763 = vpack.c.bf16 %v683, %v679
    %v764 = vpack.c.bf16 %v684, %v680
    %v765 = vpack.c.bf16 %v685, %v681
    %v766 = vpack.c.bf16 %v686, %v682
    %v767 = vpack.c.bf16 %v691, %v687
    %v768 = vpack.c.bf16 %v692, %v688
    %v769 = vpack.c.bf16 %v693, %v689
    %v770 = vpack.c.bf16 %v694, %v690
    %v771 = vpack.c.bf16 %v699, %v695
    %v772 = vpack.c.bf16 %v700, %v696
    %v773 = vpack.c.bf16 %v701, %v697
    %v774 = vpack.c.bf16 %v702, %v698
    %v775 = vpack.c.bf16 %v707, %v703
    %v776 = vpack.c.bf16 %v708, %v704
    %v777 = vpack.c.bf16 %v709, %v705
    %v778 = vpack.c.bf16 %v710, %v706
    %v779 = vpack.c.bf16 %v715, %v711
    %v780 = vpack.c.bf16 %v716, %v712
    %v781 = vpack.c.bf16 %v717, %v713
    %v782 = vpack.c.bf16 %v718, %v714
    %v783 = vld [vmem:[%s3] sm:$0xf]
    %v784 = vld [vmem:[%s3 + $0x4] sm:$0xf]
    %v785 = vld [vmem:[%s3 + $0x8] sm:$0xf]
    %v786 = vld [vmem:[%s3 + $0xc] sm:$0xf]
    %v787 = vld [vmem:[%s3 + $0x10] sm:$0xf]
    %v788 = vld [vmem:[%s3 + $0x14] sm:$0xf]
    %v789 = vld [vmem:[%s3 + $0x18] sm:$0xf]
    %v790 = vld [vmem:[%s3 + $0x1c] sm:$0xf]
    %v791 = vld [vmem:[%s3 + $0x20] sm:$0xf]
    %v792 = vld [vmem:[%s3 + $0x24] sm:$0xf]
    %v793 = vld [vmem:[%s3 + $0x28] sm:$0xf]
    %v794 = vld [vmem:[%s3 + $0x2c] sm:$0xf]
    %v795 = vld [vmem:[%s3 + $0x30] sm:$0xf]
    %v796 = vld [vmem:[%s3 + $0x34] sm:$0xf]
    %v797 = vld [vmem:[%s3 + $0x38] sm:$0xf]
    %v798 = vld [vmem:[%s3 + $0x3c] sm:$0xf]
    %v799 = vld [vmem:[%s3 + $0x40] sm:$0xf]
    %v800 = vld [vmem:[%s3 + $0x44] sm:$0xf]
    %v801 = vld [vmem:[%s3 + $0x48] sm:$0xf]
    %v802 = vld [vmem:[%s3 + $0x4c] sm:$0xf]
    %v803 = vld [vmem:[%s3 + $0x50] sm:$0xf]
    %v804 = vld [vmem:[%s3 + $0x54] sm:$0xf]
    %v805 = vld [vmem:[%s3 + $0x58] sm:$0xf]
    %v806 = vld [vmem:[%s3 + $0x5c] sm:$0xf]
    %v807 = vld [vmem:[%s3 + $0x60] sm:$0xf]
    %v808 = vld [vmem:[%s3 + $0x64] sm:$0xf]
    %v809 = vld [vmem:[%s3 + $0x68] sm:$0xf]
    %v810 = vld [vmem:[%s3 + $0x6c] sm:$0xf]
    %v811 = vld [vmem:[%s3 + $0x70] sm:$0xf]
    %v812 = vld [vmem:[%s3 + $0x74] sm:$0xf]
    %v813 = vld [vmem:[%s3 + $0x78] sm:$0xf]
    %v814 = vld [vmem:[%s3 + $0x7c] sm:$0xf]
    %v815 = vld [vmem:[%s3 + $0x80] sm:$0xf]
    %v816 = vld [vmem:[%s3 + $0x84] sm:$0xf]
    %v817 = vld [vmem:[%s3 + $0x88] sm:$0xf]
    %v818 = vld [vmem:[%s3 + $0x8c] sm:$0xf]
    %v819 = vld [vmem:[%s3 + $0x90] sm:$0xf]
    %v820 = vld [vmem:[%s3 + $0x94] sm:$0xf]
    %v821 = vld [vmem:[%s3 + $0x98] sm:$0xf]
    %v822 = vld [vmem:[%s3 + $0x9c] sm:$0xf]
    %v823 = vld [vmem:[%s3 + $0xa0] sm:$0xf]
    %v824 = vld [vmem:[%s3 + $0xa4] sm:$0xf]
    %v825 = vld [vmem:[%s3 + $0xa8] sm:$0xf]
    %v826 = vld [vmem:[%s3 + $0xac] sm:$0xf]
    %v827 = vld [vmem:[%s3 + $0xb0] sm:$0xf]
    %v828 = vld [vmem:[%s3 + $0xb4] sm:$0xf]
    %v829 = vld [vmem:[%s3 + $0xb8] sm:$0xf]
    %v830 = vld [vmem:[%s3 + $0xbc] sm:$0xf]
    %v831 = vld [vmem:[%s3 + $0xc0] sm:$0xf]
    %v832 = vld [vmem:[%s3 + $0xc4] sm:$0xf]
    %v833 = vld [vmem:[%s3 + $0xc8] sm:$0xf]
    %v834 = vld [vmem:[%s3 + $0xcc] sm:$0xf]
    %v835 = vld [vmem:[%s3 + $0xd0] sm:$0xf]
    %v836 = vld [vmem:[%s3 + $0xd4] sm:$0xf]
    %v837 = vld [vmem:[%s3 + $0xd8] sm:$0xf]
    %v838 = vld [vmem:[%s3 + $0xdc] sm:$0xf]
    %v839 = vld [vmem:[%s3 + $0xe0] sm:$0xf]
    %v840 = vld [vmem:[%s3 + $0xe4] sm:$0xf]
    %v841 = vld [vmem:[%s3 + $0xe8] sm:$0xf]
    %v842 = vld [vmem:[%s3 + $0xec] sm:$0xf]
    %v843 = vld [vmem:[%s3 + $0xf0] sm:$0xf]
    %v844 = vld [vmem:[%s3 + $0xf4] sm:$0xf]
    %v845 = vld [vmem:[%s3 + $0xf8] sm:$0xf]
    %v846 = vld [vmem:[%s3 + $0xfc] sm:$0xf]
    %v847 = vld [vmem:[%s4] sm:$0x1]
    %v849 = vlaneseq
    %v850 = vshrl.u32 %v849, 7
    %v851 = vsub.s32 0, %v850
    %v852 = vrot.slane %v847, %v851
    %v918 = vunpack.c.l.b16 %v783
    %v919 = vunpack.c.l.b16 %v784
    %v920 = vunpack.c.l.b16 %v785
    %v921 = vunpack.c.l.b16 %v786
    %v922 = vunpack.c.l.b16 %v787
    %v923 = vunpack.c.l.b16 %v788
    %v924 = vunpack.c.l.b16 %v789
    %v925 = vunpack.c.l.b16 %v790
    %v926 = vunpack.c.l.b16 %v791
    %v927 = vunpack.c.l.b16 %v792
    %v928 = vunpack.c.l.b16 %v793
    %v929 = vunpack.c.l.b16 %v794
    %v930 = vunpack.c.l.b16 %v795
    %v931 = vunpack.c.l.b16 %v796
    %v932 = vunpack.c.l.b16 %v797
    %v933 = vunpack.c.l.b16 %v798
    %v934 = vunpack.c.l.b16 %v799
    %v935 = vunpack.c.l.b16 %v800
    %v936 = vunpack.c.l.b16 %v801
    %v937 = vunpack.c.l.b16 %v802
    %v938 = vunpack.c.l.b16 %v803
    %v939 = vunpack.c.l.b16 %v804
    %v940 = vunpack.c.l.b16 %v805
    %v941 = vunpack.c.l.b16 %v806
    %v942 = vunpack.c.l.b16 %v807
    %v943 = vunpack.c.l.b16 %v808
    %v944 = vunpack.c.l.b16 %v809
    %v945 = vunpack.c.l.b16 %v810
    %v946 = vunpack.c.l.b16 %v811
    %v947 = vunpack.c.l.b16 %v812
    %v948 = vunpack.c.l.b16 %v813
    %v949 = vunpack.c.l.b16 %v814
    %v950 = vunpack.c.l.b16 %v815
    %v951 = vunpack.c.l.b16 %v816
    %v952 = vunpack.c.l.b16 %v817
    %v953 = vunpack.c.l.b16 %v818
    %v954 = vunpack.c.l.b16 %v819
    %v955 = vunpack.c.l.b16 %v820
    %v956 = vunpack.c.l.b16 %v821
    %v957 = vunpack.c.l.b16 %v822
    %v958 = vunpack.c.l.b16 %v823
    %v959 = vunpack.c.l.b16 %v824
    %v960 = vunpack.c.l.b16 %v825
    %v961 = vunpack.c.l.b16 %v826
    %v962 = vunpack.c.l.b16 %v827
    %v963 = vunpack.c.l.b16 %v828
    %v964 = vunpack.c.l.b16 %v829
    %v965 = vunpack.c.l.b16 %v830
    %v966 = vunpack.c.l.b16 %v831
    %v967 = vunpack.c.l.b16 %v832
    %v968 = vunpack.c.l.b16 %v833
    %v969 = vunpack.c.l.b16 %v834
    %v970 = vunpack.c.l.b16 %v835
    %v971 = vunpack.c.l.b16 %v836
    %v972 = vunpack.c.l.b16 %v837
    %v973 = vunpack.c.l.b16 %v838
    %v974 = vunpack.c.l.b16 %v839
    %v975 = vunpack.c.l.b16 %v840
    %v976 = vunpack.c.l.b16 %v841
    %v977 = vunpack.c.l.b16 %v842
    %v978 = vunpack.c.l.b16 %v843
    %v979 = vunpack.c.l.b16 %v844
    %v980 = vunpack.c.l.b16 %v845
    %v981 = vunpack.c.l.b16 %v846
    %v982 = vpack.c.b16 %v919, %v918
    %v983 = vpack.c.b16 %v921, %v920
    %v984 = vpack.c.b16 %v923, %v922
    %v985 = vpack.c.b16 %v925, %v924
    %v986 = vpack.c.b16 %v927, %v926
    %v987 = vpack.c.b16 %v929, %v928
    %v988 = vpack.c.b16 %v931, %v930
    %v989 = vpack.c.b16 %v933, %v932
    %v990 = vpack.c.b16 %v935, %v934
    %v991 = vpack.c.b16 %v937, %v936
    %v992 = vpack.c.b16 %v939, %v938
    %v993 = vpack.c.b16 %v941, %v940
    %v994 = vpack.c.b16 %v943, %v942
    %v995 = vpack.c.b16 %v945, %v944
    %v996 = vpack.c.b16 %v947, %v946
    %v997 = vpack.c.b16 %v949, %v948
    %v998 = vpack.c.b16 %v951, %v950
    %v999 = vpack.c.b16 %v953, %v952
    %v1000 = vpack.c.b16 %v955, %v954
    %v1001 = vpack.c.b16 %v957, %v956
    %v1002 = vpack.c.b16 %v959, %v958
    %v1003 = vpack.c.b16 %v961, %v960
    %v1004 = vpack.c.b16 %v963, %v962
    %v1005 = vpack.c.b16 %v965, %v964
    %v1006 = vpack.c.b16 %v967, %v966
    %v1007 = vpack.c.b16 %v969, %v968
    %v1008 = vpack.c.b16 %v971, %v970
    %v1009 = vpack.c.b16 %v973, %v972
    %v1010 = vpack.c.b16 %v975, %v974
    %v1011 = vpack.c.b16 %v977, %v976
    %v1012 = vpack.c.b16 %v979, %v978
    %v1013 = vpack.c.b16 %v981, %v980
    %1046 = vmatprep.subr.bf16.mxu0 0
    %1047 = vmatpush1.bf16.msra.mxu0 %v982
    %1048 = vmatprep.subr.bf16.mxu0 0
    %1049 = vmatpush1.bf16.msra.mxu0 %v983
    %1050 = vmatprep.subr.bf16.mxu0 0
    %1051 = vmatpush1.bf16.msra.mxu0 %v984
    %1052 = vmatprep.subr.bf16.mxu0 0
    %1053 = vmatpush1.bf16.msra.mxu0 %v985
    %1054 = vmatprep.subr.bf16.mxu0 0
    %1055 = vmatpush1.bf16.msra.mxu0 %v986
    %1056 = vmatprep.subr.bf16.mxu0 0
    %1057 = vmatpush1.bf16.msra.mxu0 %v987
    %1058 = vmatprep.subr.bf16.mxu0 0
    %1059 = vmatpush1.bf16.msra.mxu0 %v988
    %1060 = vmatprep.subr.bf16.mxu0 0
    %1061 = vmatpush1.bf16.msra.mxu0 %v989
    %1062 = vmatprep.subr.bf16.mxu0 0
    %1063 = vmatpush1.bf16.msra.mxu0 %v990
    %1064 = vmatprep.subr.bf16.mxu0 0
    %1065 = vmatpush1.bf16.msra.mxu0 %v991
    %1066 = vmatprep.subr.bf16.mxu0 0
    %1067 = vmatpush1.bf16.msra.mxu0 %v992
    %1068 = vmatprep.subr.bf16.mxu0 0
    %1069 = vmatpush1.bf16.msra.mxu0 %v993
    %1070 = vmatprep.subr.bf16.mxu0 0
    %1071 = vmatpush1.bf16.msra.mxu0 %v994
    %1072 = vmatprep.subr.bf16.mxu0 0
    %1073 = vmatpush1.bf16.msra.mxu0 %v995
    %1074 = vmatprep.subr.bf16.mxu0 0
    %1075 = vmatpush1.bf16.msra.mxu0 %v996
    %1076 = vmatprep.subr.bf16.mxu0 0
    %1077 = vmatpush1.bf16.msra.mxu0 %v997
    %1078 = vmatprep.mubr.bf16.mxu0 %v720
    %1079 = vmatmul.mubr.bf16.gmra.mrb[0].mxu0 %v719
    %v1080 = vpop.f32.mrb[0].mxu0
    %v1081 = vadd.f32 %v852, %v1080
    %v1082 = vpop.f32.mrb[0].mxu0
    %v1083 = vpop.f32.mrb[0].mxu0
    %v1084 = vadd.f32 %v852, %v1083
    %v1085 = vpop.f32.mrb[0].mxu0
    %1086 = vmatprep.mubr.bf16.mxu0 %v724
    %1087 = vmatmul.mubr.bf16.gmra.mrb[0].mxu0 %v723
    %v1088 = vpop.f32.mrb[0].mxu0
    %v1089 = vadd.f32 %v852, %v1088
    %v1090 = vpop.f32.mrb[0].mxu0
    %v1091 = vpop.f32.mrb[0].mxu0
    %v1092 = vadd.f32 %v852, %v1091
    %v1093 = vpop.f32.mrb[0].mxu0
    %1094 = vmatprep.mubr.bf16.mxu0 %v728
    %1095 = vmatmul.mubr.bf16.gmra.mrb[0].mxu0 %v727
    %v1096 = vpop.f32.mrb[0].mxu0
    %v1097 = vadd.f32 %v852, %v1096
    %v1098 = vpop.f32.mrb[0].mxu0
    %v1099 = vpop.f32.mrb[0].mxu0
    %v1100 = vadd.f32 %v852, %v1099
    %v1101 = vpop.f32.mrb[0].mxu0
    %1102 = vmatprep.mubr.bf16.mxu0 %v732
    %1103 = vmatmul.mubr.bf16.gmra.mrb[0].mxu0 %v731
    %v1104 = vpop.f32.mrb[0].mxu0
    %v1105 = vadd.f32 %v852, %v1104
    %v1106 = vpop.f32.mrb[0].mxu0
    %v1107 = vpop.f32.mrb[0].mxu0
    %v1108 = vadd.f32 %v852, %v1107
    %v1109 = vpop.f32.mrb[0].mxu0
    %1110 = vmatprep.mubr.bf16.mxu0 %v736
    %1111 = vmatmul.mubr.bf16.gmra.mrb[0].mxu0 %v735
    %v1112 = vpop.f32.mrb[0].mxu0
    %v1113 = vadd.f32 %v852, %v1112
    %v1114 = vpop.f32.mrb[0].mxu0
    %v1115 = vpop.f32.mrb[0].mxu0
    %v1116 = vadd.f32 %v852, %v1115
    %v1117 = vpop.f32.mrb[0].mxu0
    %1118 = vmatprep.mubr.bf16.mxu0 %v740
    %1119 = vmatmul.mubr.bf16.gmra.mrb[0].mxu0 %v739
    %v1120 = vpop.f32.mrb[0].mxu0
    %v1121 = vadd.f32 %v852, %v1120
    %v1122 = vpop.f32.mrb[0].mxu0
    %v1123 = vpop.f32.mrb[0].mxu0
    %v1124 = vadd.f32 %v852, %v1123
    %v1125 = vpop.f32.mrb[0].mxu0
    %1126 = vmatprep.mubr.bf16.mxu0 %v744
    %1127 = vmatmul.mubr.bf16.gmra.mrb[0].mxu0 %v743
    %v1128 = vpop.f32.mrb[0].mxu0
    %v1129 = vadd.f32 %v852, %v1128
    %v1130 = vpop.f32.mrb[0].mxu0
    %v1131 = vpop.f32.mrb[0].mxu0
    %v1132 = vadd.f32 %v852, %v1131
    %v1133 = vpop.f32.mrb[0].mxu0
    %1134 = vmatprep.mubr.bf16.mxu0 %v748
    %1135 = vmatmul.mubr.bf16.gmra.mrb[0].mxu0 %v747
    %v1136 = vpop.f32.mrb[0].mxu0
    %v1137 = vadd.f32 %v852, %v1136
    %v1138 = vpop.f32.mrb[0].mxu0
    %v1139 = vpop.f32.mrb[0].mxu0
    %v1140 = vadd.f32 %v852, %v1139
    %v1141 = vpop.f32.mrb[0].mxu0
    %1142 = vmatprep.mubr.bf16.mxu0 %v752
    %1143 = vmatmul.mubr.bf16.gmra.mrb[0].mxu0 %v751
    %v1144 = vpop.f32.mrb[0].mxu0
    %v1145 = vadd.f32 %v852, %v1144
    %v1146 = vpop.f32.mrb[0].mxu0
    %v1147 = vpop.f32.mrb[0].mxu0
    %v1148 = vadd.f32 %v852, %v1147
    %v1149 = vpop.f32.mrb[0].mxu0
    %1150 = vmatprep.mubr.bf16.mxu0 %v756
    %1151 = vmatmul.mubr.bf16.gmra.mrb[0].mxu0 %v755
    %v1152 = vpop.f32.mrb[0].mxu0
    %v1153 = vadd.f32 %v852, %v1152
    %v1154 = vpop.f32.mrb[0].mxu0
    %v1155 = vpop.f32.mrb[0].mxu0
    %v1156 = vadd.f32 %v852, %v1155
    %v1157 = vpop.f32.mrb[0].mxu0
    %1158 = vmatprep.mubr.bf16.mxu0 %v760
    %1159 = vmatmul.mubr.bf16.gmra.mrb[0].mxu0 %v759
    %v1160 = vpop.f32.mrb[0].mxu0
    %v1161 = vadd.f32 %v852, %v1160
    %v1162 = vpop.f32.mrb[0].mxu0
    %v1163 = vpop.f32.mrb[0].mxu0
    %v1164 = vadd.f32 %v852, %v1163
    %v1165 = vpop.f32.mrb[0].mxu0
    %1166 = vmatprep.mubr.bf16.mxu0 %v764
    %1167 = vmatmul.mubr.bf16.gmra.mrb[0].mxu0 %v763
    %v1168 = vpop.f32.mrb[0].mxu0
    %v1169 = vadd.f32 %v852, %v1168
    %v1170 = vpop.f32.mrb[0].mxu0
    %v1171 = vpop.f32.mrb[0].mxu0
    %v1172 = vadd.f32 %v852, %v1171
    %v1173 = vpop.f32.mrb[0].mxu0
    %1174 = vmatprep.mubr.bf16.mxu0 %v768
    %1175 = vmatmul.mubr.bf16.gmra.mrb[0].mxu0 %v767
    %v1176 = vpop.f32.mrb[0].mxu0
    %v1177 = vadd.f32 %v852, %v1176
    %v1178 = vpop.f32.mrb[0].mxu0
    %v1179 = vpop.f32.mrb[0].mxu0
    %v1180 = vadd.f32 %v852, %v1179
    %v1181 = vpop.f32.mrb[0].mxu0
    %1182 = vmatprep.mubr.bf16.mxu0 %v772
    %1183 = vmatmul.mubr.bf16.gmra.mrb[0].mxu0 %v771
    %v1184 = vpop.f32.mrb[0].mxu0
    %v1185 = vadd.f32 %v852, %v1184
    %v1186 = vpop.f32.mrb[0].mxu0
    %v1187 = vpop.f32.mrb[0].mxu0
    %v1188 = vadd.f32 %v852, %v1187
    %v1189 = vpop.f32.mrb[0].mxu0
    %1190 = vmatprep.mubr.bf16.mxu0 %v776
    %1191 = vmatmul.mubr.bf16.gmra.mrb[0].mxu0 %v775
    %v1192 = vpop.f32.mrb[0].mxu0
    %v1193 = vadd.f32 %v852, %v1192
    %v1194 = vpop.f32.mrb[0].mxu0
    %v1195 = vpop.f32.mrb[0].mxu0
    %v1196 = vadd.f32 %v852, %v1195
    %v1197 = vpop.f32.mrb[0].mxu0
    %1198 = vmatprep.mubr.bf16.mxu0 %v780
    %1199 = vmatmul.mubr.bf16.gmra.mrb[0].mxu0 %v779
    %v1200 = vpop.f32.mrb[0].mxu0
    %v1201 = vadd.f32 %v852, %v1200
    %v1202 = vpop.f32.mrb[0].mxu0
    %v1203 = vpop.f32.mrb[0].mxu0
    %v1204 = vadd.f32 %v852, %v1203
    %v1205 = vpop.f32.mrb[0].mxu0
    %1206 = vdwg.mxu0
    %1207 = vmatprep.subr.bf16.mxu0 0
    %1208 = vmatpush1.bf16.msra.mxu0 %v998
    %1209 = vmatprep.subr.bf16.mxu0 0
    %1210 = vmatpush1.bf16.msra.mxu0 %v999
    %1211 = vmatprep.subr.bf16.mxu0 0
    %1212 = vmatpush1.bf16.msra.mxu0 %v1000
    %1213 = vmatprep.subr.bf16.mxu0 0
    %1214 = vmatpush1.bf16.msra.mxu0 %v1001
    %1215 = vmatprep.subr.bf16.mxu0 0
    %1216 = vmatpush1.bf16.msra.mxu0 %v1002
    %1217 = vmatprep.subr.bf16.mxu0 0
    %1218 = vmatpush1.bf16.msra.mxu0 %v1003
    %1219 = vmatprep.subr.bf16.mxu0 0
    %1220 = vmatpush1.bf16.msra.mxu0 %v1004
    %1221 = vmatprep.subr.bf16.mxu0 0
    %1222 = vmatpush1.bf16.msra.mxu0 %v1005
    %1223 = vmatprep.subr.bf16.mxu0 0
    %1224 = vmatpush1.bf16.msra.mxu0 %v1006
    %1225 = vmatprep.subr.bf16.mxu0 0
    %1226 = vmatpush1.bf16.msra.mxu0 %v1007
    %1227 = vmatprep.subr.bf16.mxu0 0
    %1228 = vmatpush1.bf16.msra.mxu0 %v1008
    %1229 = vmatprep.subr.bf16.mxu0 0
    %1230 = vmatpush1.bf16.msra.mxu0 %v1009
    %1231 = vmatprep.subr.bf16.mxu0 0
    %1232 = vmatpush1.bf16.msra.mxu0 %v1010
    %1233 = vmatprep.subr.bf16.mxu0 0
    %1234 = vmatpush1.bf16.msra.mxu0 %v1011
    %1235 = vmatprep.subr.bf16.mxu0 0
    %1236 = vmatpush1.bf16.msra.mxu0 %v1012
    %1237 = vmatprep.subr.bf16.mxu0 0
    %1238 = vmatpush1.bf16.msra.mxu0 %v1013
    %1239 = vmatprep.mubr.bf16.mxu0 %v722
    %1240 = vmatmul.mubr.bf16.gmra.mrb[0].mxu0 %v721
    %v1241 = vpop.f32.mrb[0].mxu0
    %v1242 = vadd.f32 %v1081, %v1241
    %v1243 = vpop.f32.mrb[0].mxu0
    %v1244 = vpop.f32.mrb[0].mxu0
    %v1245 = vadd.f32 %v1084, %v1244
    %v1246 = vpop.f32.mrb[0].mxu0
    %1247 = vmatprep.mubr.bf16.mxu0 %v726
    %1248 = vmatmul.mubr.bf16.gmra.mrb[0].mxu0 %v725
    %v1249 = vpop.f32.mrb[0].mxu0
    %v1250 = vadd.f32 %v1089, %v1249
    %v1251 = vpop.f32.mrb[0].mxu0
    %v1252 = vpop.f32.mrb[0].mxu0
    %v1253 = vadd.f32 %v1092, %v1252
    %v1254 = vpop.f32.mrb[0].mxu0
    %1255 = vmatprep.mubr.bf16.mxu0 %v730
    %1256 = vmatmul.mubr.bf16.gmra.mrb[0].mxu0 %v729
    %v1257 = vpop.f32.mrb[0].mxu0
    %v1258 = vadd.f32 %v1097, %v1257
    %v1259 = vpop.f32.mrb[0].mxu0
    %v1260 = vpop.f32.mrb[0].mxu0
    %v1261 = vadd.f32 %v1100, %v1260
    %v1262 = vpop.f32.mrb[0].mxu0
    %1263 = vmatprep.mubr.bf16.mxu0 %v734
    %1264 = vmatmul.mubr.bf16.gmra.mrb[0].mxu0 %v733
    %v1265 = vpop.f32.mrb[0].mxu0
    %v1266 = vadd.f32 %v1105, %v1265
    %v1267 = vpop.f32.mrb[0].mxu0
    %v1268 = vpop.f32.mrb[0].mxu0
    %v1269 = vadd.f32 %v1108, %v1268
    %v1270 = vpop.f32.mrb[0].mxu0
    %1271 = vmatprep.mubr.bf16.mxu0 %v738
    %1272 = vmatmul.mubr.bf16.gmra.mrb[0].mxu0 %v737
    %v1273 = vpop.f32.mrb[0].mxu0
    %v1274 = vadd.f32 %v1113, %v1273
    %v1275 = vpop.f32.mrb[0].mxu0
    %v1276 = vpop.f32.mrb[0].mxu0
    %v1277 = vadd.f32 %v1116, %v1276
    %v1278 = vpop.f32.mrb[0].mxu0
    %1279 = vmatprep.mubr.bf16.mxu0 %v742
    %1280 = vmatmul.mubr.bf16.gmra.mrb[0].mxu0 %v741
    %v1281 = vpop.f32.mrb[0].mxu0
    %v1282 = vadd.f32 %v1121, %v1281
    %v1283 = vpop.f32.mrb[0].mxu0
    %v1284 = vpop.f32.mrb[0].mxu0
    %v1285 = vadd.f32 %v1124, %v1284
    %v1286 = vpop.f32.mrb[0].mxu0
    %1287 = vmatprep.mubr.bf16.mxu0 %v746
    %1288 = vmatmul.mubr.bf16.gmra.mrb[0].mxu0 %v745
    %v1289 = vpop.f32.mrb[0].mxu0
    %v1290 = vadd.f32 %v1129, %v1289
    %v1291 = vpop.f32.mrb[0].mxu0
    %v1292 = vpop.f32.mrb[0].mxu0
    %v1293 = vadd.f32 %v1132, %v1292
    %v1294 = vpop.f32.mrb[0].mxu0
    %1295 = vmatprep.mubr.bf16.mxu0 %v750
    %1296 = vmatmul.mubr.bf16.gmra.mrb[0].mxu0 %v749
    %v1297 = vpop.f32.mrb[0].mxu0
    %v1298 = vadd.f32 %v1137, %v1297
    %v1299 = vpop.f32.mrb[0].mxu0
    %v1300 = vpop.f32.mrb[0].mxu0
    %v1301 = vadd.f32 %v1140, %v1300
    %v1302 = vpop.f32.mrb[0].mxu0
    %1303 = vmatprep.mubr.bf16.mxu0 %v754
    %1304 = vmatmul.mubr.bf16.gmra.mrb[0].mxu0 %v753
    %v1305 = vpop.f32.mrb[0].mxu0
    %v1306 = vadd.f32 %v1145, %v1305
    %v1307 = vpop.f32.mrb[0].mxu0
    %v1308 = vpop.f32.mrb[0].mxu0
    %v1309 = vadd.f32 %v1148, %v1308
    %v1310 = vpop.f32.mrb[0].mxu0
    %1311 = vmatprep.mubr.bf16.mxu0 %v758
    %1312 = vmatmul.mubr.bf16.gmra.mrb[0].mxu0 %v757
    %v1313 = vpop.f32.mrb[0].mxu0
    %v1314 = vadd.f32 %v1153, %v1313
    %v1315 = vpop.f32.mrb[0].mxu0
    %v1316 = vpop.f32.mrb[0].mxu0
    %v1317 = vadd.f32 %v1156, %v1316
    %v1318 = vpop.f32.mrb[0].mxu0
    %1319 = vmatprep.mubr.bf16.mxu0 %v762
    %1320 = vmatmul.mubr.bf16.gmra.mrb[0].mxu0 %v761
    %v1321 = vpop.f32.mrb[0].mxu0
    %v1322 = vadd.f32 %v1161, %v1321
    %v1323 = vpop.f32.mrb[0].mxu0
    %v1324 = vpop.f32.mrb[0].mxu0
    %v1325 = vadd.f32 %v1164, %v1324
    %v1326 = vpop.f32.mrb[0].mxu0
    %1327 = vmatprep.mubr.bf16.mxu0 %v766
    %1328 = vmatmul.mubr.bf16.gmra.mrb[0].mxu0 %v765
    %v1329 = vpop.f32.mrb[0].mxu0
    %v1330 = vadd.f32 %v1169, %v1329
    %v1331 = vpop.f32.mrb[0].mxu0
    %v1332 = vpop.f32.mrb[0].mxu0
    %v1333 = vadd.f32 %v1172, %v1332
    %v1334 = vpop.f32.mrb[0].mxu0
    %1335 = vmatprep.mubr.bf16.mxu0 %v770
    %1336 = vmatmul.mubr.bf16.gmra.mrb[0].mxu0 %v769
    %v1337 = vpop.f32.mrb[0].mxu0
    %v1338 = vadd.f32 %v1177, %v1337
    %v1339 = vpop.f32.mrb[0].mxu0
    %v1340 = vpop.f32.mrb[0].mxu0
    %v1341 = vadd.f32 %v1180, %v1340
    %v1342 = vpop.f32.mrb[0].mxu0
    %1343 = vmatprep.mubr.bf16.mxu0 %v774
    %1344 = vmatmul.mubr.bf16.gmra.mrb[0].mxu0 %v773
    %v1345 = vpop.f32.mrb[0].mxu0
    %v1346 = vadd.f32 %v1185, %v1345
    %v1347 = vpop.f32.mrb[0].mxu0
    %v1348 = vpop.f32.mrb[0].mxu0
    %v1349 = vadd.f32 %v1188, %v1348
    %v1350 = vpop.f32.mrb[0].mxu0
    %1351 = vmatprep.mubr.bf16.mxu0 %v778
    %1352 = vmatmul.mubr.bf16.gmra.mrb[0].mxu0 %v777
    %v1353 = vpop.f32.mrb[0].mxu0
    %v1354 = vadd.f32 %v1193, %v1353
    %v1355 = vpop.f32.mrb[0].mxu0
    %v1356 = vpop.f32.mrb[0].mxu0
    %v1357 = vadd.f32 %v1196, %v1356
    %v1358 = vpop.f32.mrb[0].mxu0
    %1359 = vmatprep.mubr.bf16.mxu0 %v782
    %1360 = vmatmul.mubr.bf16.gmra.mrb[0].mxu0 %v781
    %v1361 = vpop.f32.mrb[0].mxu0
    %v1362 = vadd.f32 %v1201, %v1361
    %v1363 = vpop.f32.mrb[0].mxu0
    %v1364 = vpop.f32.mrb[0].mxu0
    %v1365 = vadd.f32 %v1204, %v1364
    %v1366 = vpop.f32.mrb[0].mxu0
    %1367 = vdwg.mxu0
    %v1368 = vmax.f32 %v1242, 0.0
    %v1369 = vmax.f32 %v1245, 0.0
    %v1370 = vmax.f32 %v1250, 0.0
    %v1371 = vmax.f32 %v1253, 0.0
    %v1372 = vmax.f32 %v1258, 0.0
    %v1373 = vmax.f32 %v1261, 0.0
    %v1374 = vmax.f32 %v1266, 0.0
    %v1375 = vmax.f32 %v1269, 0.0
    %v1376 = vmax.f32 %v1274, 0.0
    %v1377 = vmax.f32 %v1277, 0.0
    %v1378 = vmax.f32 %v1282, 0.0
    %v1379 = vmax.f32 %v1285, 0.0
    %v1380 = vmax.f32 %v1290, 0.0
    %v1381 = vmax.f32 %v1293, 0.0
    %v1382 = vmax.f32 %v1298, 0.0
    %v1383 = vmax.f32 %v1301, 0.0
    %v1384 = vmax.f32 %v1306, 0.0
    %v1385 = vmax.f32 %v1309, 0.0
    %v1386 = vmax.f32 %v1314, 0.0
    %v1387 = vmax.f32 %v1317, 0.0
    %v1388 = vmax.f32 %v1322, 0.0
    %v1389 = vmax.f32 %v1325, 0.0
    %v1390 = vmax.f32 %v1330, 0.0
    %v1391 = vmax.f32 %v1333, 0.0
    %v1392 = vmax.f32 %v1338, 0.0
    %v1393 = vmax.f32 %v1341, 0.0
    %v1394 = vmax.f32 %v1346, 0.0
    %v1395 = vmax.f32 %v1349, 0.0
    %v1396 = vmax.f32 %v1354, 0.0
    %v1397 = vmax.f32 %v1357, 0.0
    %v1398 = vmax.f32 %v1362, 0.0
    %v1399 = vmax.f32 %v1365, 0.0
    %v1400 = vpack.c.bf16 %v1369, %v1368
    %v1401 = vpack.c.bf16 %v1371, %v1370
    %v1402 = vpack.c.bf16 %v1373, %v1372
    %v1403 = vpack.c.bf16 %v1375, %v1374
    %v1404 = vpack.c.bf16 %v1377, %v1376
    %v1405 = vpack.c.bf16 %v1379, %v1378
    %v1406 = vpack.c.bf16 %v1381, %v1380
    %v1407 = vpack.c.bf16 %v1383, %v1382
    %v1408 = vpack.c.bf16 %v1385, %v1384
    %v1409 = vpack.c.bf16 %v1387, %v1386
    %v1410 = vpack.c.bf16 %v1389, %v1388
    %v1411 = vpack.c.bf16 %v1391, %v1390
    %v1412 = vpack.c.bf16 %v1393, %v1392
    %v1413 = vpack.c.bf16 %v1395, %v1394
    %v1414 = vpack.c.bf16 %v1397, %v1396
    %v1415 = vpack.c.bf16 %v1399, %v1398
    %v1416 = vld [vmem:[#allocation2] sm:$0xf]
    %v1417 = vld [vmem:[#allocation2 + $0x4] sm:$0xf]
    %v1418 = vld [vmem:[#allocation2 + $0x8] sm:$0xf]
    %v1419 = vld [vmem:[#allocation2 + $0xc] sm:$0xf]
    %v1420 = vld [vmem:[#allocation2 + $0x10] sm:$0xf]
    %v1421 = vld [vmem:[#allocation2 + $0x14] sm:$0xf]
    %v1422 = vld [vmem:[#allocation2 + $0x18] sm:$0xf]
    %v1423 = vld [vmem:[#allocation2 + $0x1c] sm:$0xf]
    %v1424 = vld [vmem:[#allocation2 + $0x20] sm:$0xf]
    %v1425 = vld [vmem:[#allocation2 + $0x24] sm:$0xf]
    %v1426 = vld [vmem:[#allocation2 + $0x28] sm:$0xf]
    %v1427 = vld [vmem:[#allocation2 + $0x2c] sm:$0xf]
    %v1428 = vld [vmem:[#allocation2 + $0x30] sm:$0xf]
    %v1429 = vld [vmem:[#allocation2 + $0x34] sm:$0xf]
    %v1430 = vld [vmem:[#allocation2 + $0x38] sm:$0xf]
    %v1431 = vld [vmem:[#allocation2 + $0x3c] sm:$0xf]
    %v1432 = vld [vmem:[%s6] sm:$0x1]
    %v1434 = vlaneseq
    %v1435 = vshrl.u32 %v1434, 7
    %v1436 = vsub.s32 0, %v1435
    %v1437 = vrot.slane %v1432, %v1436
    %v1455 = vunpack.c.l.b16 %v1416
    %v1456 = vunpack.c.l.b16 %v1417
    %v1457 = vunpack.c.l.b16 %v1418
    %v1458 = vunpack.c.l.b16 %v1419
    %v1459 = vunpack.c.l.b16 %v1420
    %v1460 = vunpack.c.l.b16 %v1421
    %v1461 = vunpack.c.l.b16 %v1422
    %v1462 = vunpack.c.l.b16 %v1423
    %v1463 = vunpack.c.l.b16 %v1424
    %v1464 = vunpack.c.l.b16 %v1425
    %v1465 = vunpack.c.l.b16 %v1426
    %v1466 = vunpack.c.l.b16 %v1427
    %v1467 = vunpack.c.l.b16 %v1428
    %v1468 = vunpack.c.l.b16 %v1429
    %v1469 = vunpack.c.l.b16 %v1430
    %v1470 = vunpack.c.l.b16 %v1431
    %v1471 = vpack.c.b16 %v1456, %v1455
    %v1472 = vpack.c.b16 %v1458, %v1457
    %v1473 = vpack.c.b16 %v1460, %v1459
    %v1474 = vpack.c.b16 %v1462, %v1461
    %v1475 = vpack.c.b16 %v1464, %v1463
    %v1476 = vpack.c.b16 %v1466, %v1465
    %v1477 = vpack.c.b16 %v1468, %v1467
    %v1478 = vpack.c.b16 %v1470, %v1469
    %1487 = vmatprep.subr.bf16.mxu0 0
    %1488 = vmatpush1.bf16.msra.mxu0 %v1471
    %1489 = vmatprep.subr.bf16.mxu0 0
    %1490 = vmatpush1.bf16.msra.mxu0 %v1472
    %1491 = vmatprep.subr.bf16.mxu0 0
    %1492 = vmatpush1.bf16.msra.mxu0 %v1473
    %1493 = vmatprep.subr.bf16.mxu0 0
    %1494 = vmatpush1.bf16.msra.mxu0 %v1474
    %1495 = vmatprep.subr.bf16.mxu0 0
    %1496 = vmatpush1.bf16.msra.mxu0 %v1475
    %1497 = vmatprep.subr.bf16.mxu0 0
    %1498 = vmatpush1.bf16.msra.mxu0 %v1476
    %1499 = vmatprep.subr.bf16.mxu0 0
    %1500 = vmatpush1.bf16.msra.mxu0 %v1477
    %1501 = vmatprep.subr.bf16.mxu0 0
    %1502 = vmatpush1.bf16.msra.mxu0 %v1478
    %1503 = vmatprep.subr.bf16.mxu0 0
    %1504 = vmatpush1.bf16.msra.mxu0 0
    %1505 = vmatprep.subr.bf16.mxu0 0
    %1506 = vmatpush1.bf16.msra.mxu0 0
    %1507 = vmatprep.subr.bf16.mxu0 0
    %1508 = vmatpush1.bf16.msra.mxu0 0
    %1509 = vmatprep.subr.bf16.mxu0 0
    %1510 = vmatpush1.bf16.msra.mxu0 0
    %1511 = vmatprep.subr.bf16.mxu0 0
    %1512 = vmatpush1.bf16.msra.mxu0 0
    %1513 = vmatprep.subr.bf16.mxu0 0
    %1514 = vmatpush1.bf16.msra.mxu0 0
    %1515 = vmatprep.subr.bf16.mxu0 0
    %1516 = vmatpush1.bf16.msra.mxu0 0
    %1517 = vmatprep.subr.bf16.mxu0 0
    %1518 = vmatpush1.bf16.msra.mxu0 0
    %1519 = vmatprep.mubr.bf16.mxu0 0
    %1520 = vmatmul.mubr.bf16.gmra.mrb[0].mxu0 %v1400
    %v1521 = vpop.f32.mrb[0].mxu0
    %v1522 = vadd.f32 %v1437, %v1521
    %v1523 = vpop.f32.mrb[0].mxu0
    %v1524 = vpop.f32.mrb[0].mxu0
    %v1525 = vadd.f32 %v1437, %v1524
    %v1526 = vpop.f32.mrb[0].mxu0
    %1527 = vmatprep.mubr.bf16.mxu0 0
    %1528 = vmatmul.mubr.bf16.gmra.mrb[0].mxu0 %v1401
    %v1529 = vpop.f32.mrb[0].mxu0
    %v1530 = vadd.f32 %v1437, %v1529
    %v1531 = vpop.f32.mrb[0].mxu0
    %v1532 = vpop.f32.mrb[0].mxu0
    %v1533 = vadd.f32 %v1437, %v1532
    %v1534 = vpop.f32.mrb[0].mxu0
    %1535 = vmatprep.mubr.bf16.mxu0 0
    %1536 = vmatmul.mubr.bf16.gmra.mrb[0].mxu0 %v1402
    %v1537 = vpop.f32.mrb[0].mxu0
    %v1538 = vadd.f32 %v1437, %v1537
    %v1539 = vpop.f32.mrb[0].mxu0
    %v1540 = vpop.f32.mrb[0].mxu0
    %v1541 = vadd.f32 %v1437, %v1540
    %v1542 = vpop.f32.mrb[0].mxu0
    %1543 = vmatprep.mubr.bf16.mxu0 0
    %1544 = vmatmul.mubr.bf16.gmra.mrb[0].mxu0 %v1403
    %v1545 = vpop.f32.mrb[0].mxu0
    %v1546 = vadd.f32 %v1437, %v1545
    %v1547 = vpop.f32.mrb[0].mxu0
    %v1548 = vpop.f32.mrb[0].mxu0
    %v1549 = vadd.f32 %v1437, %v1548
    %v1550 = vpop.f32.mrb[0].mxu0
    %1551 = vmatprep.mubr.bf16.mxu0 0
    %1552 = vmatmul.mubr.bf16.gmra.mrb[0].mxu0 %v1404
    %v1553 = vpop.f32.mrb[0].mxu0
    %v1554 = vadd.f32 %v1437, %v1553
    %v1555 = vpop.f32.mrb[0].mxu0
    %v1556 = vpop.f32.mrb[0].mxu0
    %v1557 = vadd.f32 %v1437, %v1556
    %v1558 = vpop.f32.mrb[0].mxu0
    %1559 = vmatprep.mubr.bf16.mxu0 0
    %1560 = vmatmul.mubr.bf16.gmra.mrb[0].mxu0 %v1405
    %v1561 = vpop.f32.mrb[0].mxu0
    %v1562 = vadd.f32 %v1437, %v1561
    %v1563 = vpop.f32.mrb[0].mxu0
    %v1564 = vpop.f32.mrb[0].mxu0
    %v1565 = vadd.f32 %v1437, %v1564
    %v1566 = vpop.f32.mrb[0].mxu0
    %1567 = vmatprep.mubr.bf16.mxu0 0
    %1568 = vmatmul.mubr.bf16.gmra.mrb[0].mxu0 %v1406
    %v1569 = vpop.f32.mrb[0].mxu0
    %v1570 = vadd.f32 %v1437, %v1569
    %v1571 = vpop.f32.mrb[0].mxu0
    %v1572 = vpop.f32.mrb[0].mxu0
    %v1573 = vadd.f32 %v1437, %v1572
    %v1574 = vpop.f32.mrb[0].mxu0
    %1575 = vmatprep.mubr.bf16.mxu0 0
    %1576 = vmatmul.mubr.bf16.gmra.mrb[0].mxu0 %v1407
    %v1577 = vpop.f32.mrb[0].mxu0
    %v1578 = vadd.f32 %v1437, %v1577
    %v1579 = vpop.f32.mrb[0].mxu0
    %v1580 = vpop.f32.mrb[0].mxu0
    %v1581 = vadd.f32 %v1437, %v1580
    %v1582 = vpop.f32.mrb[0].mxu0
    %1583 = vmatprep.mubr.bf16.mxu0 0
    %1584 = vmatmul.mubr.bf16.gmra.mrb[0].mxu0 %v1408
    %v1585 = vpop.f32.mrb[0].mxu0
    %v1586 = vadd.f32 %v1437, %v1585
    %v1587 = vpop.f32.mrb[0].mxu0
    %v1588 = vpop.f32.mrb[0].mxu0
    %v1589 = vadd.f32 %v1437, %v1588
    %v1590 = vpop.f32.mrb[0].mxu0
    %1591 = vmatprep.mubr.bf16.mxu0 0
    %1592 = vmatmul.mubr.bf16.gmra.mrb[0].mxu0 %v1409
    %v1593 = vpop.f32.mrb[0].mxu0
    %v1594 = vadd.f32 %v1437, %v1593
    %v1595 = vpop.f32.mrb[0].mxu0
    %v1596 = vpop.f32.mrb[0].mxu0
    %v1597 = vadd.f32 %v1437, %v1596
    %v1598 = vpop.f32.mrb[0].mxu0
    %1599 = vmatprep.mubr.bf16.mxu0 0
    %1600 = vmatmul.mubr.bf16.gmra.mrb[0].mxu0 %v1410
    %v1601 = vpop.f32.mrb[0].mxu0
    %v1602 = vadd.f32 %v1437, %v1601
    %v1603 = vpop.f32.mrb[0].mxu0
    %v1604 = vpop.f32.mrb[0].mxu0
    %v1605 = vadd.f32 %v1437, %v1604
    %v1606 = vpop.f32.mrb[0].mxu0
    %1607 = vmatprep.mubr.bf16.mxu0 0
    %1608 = vmatmul.mubr.bf16.gmra.mrb[0].mxu0 %v1411
    %v1609 = vpop.f32.mrb[0].mxu0
    %v1610 = vadd.f32 %v1437, %v1609
    %v1611 = vpop.f32.mrb[0].mxu0
    %v1612 = vpop.f32.mrb[0].mxu0
    %v1613 = vadd.f32 %v1437, %v1612
    %v1614 = vpop.f32.mrb[0].mxu0
    %1615 = vmatprep.mubr.bf16.mxu0 0
    %1616 = vmatmul.mubr.bf16.gmra.mrb[0].mxu0 %v1412
    %v1617 = vpop.f32.mrb[0].mxu0
    %v1618 = vadd.f32 %v1437, %v1617
    %v1619 = vpop.f32.mrb[0].mxu0
    %v1620 = vpop.f32.mrb[0].mxu0
    %v1621 = vadd.f32 %v1437, %v1620
    %v1622 = vpop.f32.mrb[0].mxu0
    %1623 = vmatprep.mubr.bf16.mxu0 0
    %1624 = vmatmul.mubr.bf16.gmra.mrb[0].mxu0 %v1413
    %v1625 = vpop.f32.mrb[0].mxu0
    %v1626 = vadd.f32 %v1437, %v1625
    %v1627 = vpop.f32.mrb[0].mxu0
    %v1628 = vpop.f32.mrb[0].mxu0
    %v1629 = vadd.f32 %v1437, %v1628
    %v1630 = vpop.f32.mrb[0].mxu0
    %1631 = vmatprep.mubr.bf16.mxu0 0
    %1632 = vmatmul.mubr.bf16.gmra.mrb[0].mxu0 %v1414
    %v1633 = vpop.f32.mrb[0].mxu0
    %v1634 = vadd.f32 %v1437, %v1633
    %v1635 = vpop.f32.mrb[0].mxu0
    %v1636 = vpop.f32.mrb[0].mxu0
    %v1637 = vadd.f32 %v1437, %v1636
    %v1638 = vpop.f32.mrb[0].mxu0
    %1639 = vmatprep.mubr.bf16.mxu0 0
    %1640 = vmatmul.mubr.bf16.gmra.mrb[0].mxu0 %v1415
    %v1641 = vpop.f32.mrb[0].mxu0
    %v1642 = vadd.f32 %v1437, %v1641
    %v1643 = vpop.f32.mrb[0].mxu0
    %v1644 = vpop.f32.mrb[0].mxu0
    %v1645 = vadd.f32 %v1437, %v1644
    %v1646 = vpop.f32.mrb[0].mxu0
    %1647 = vdwg.mxu0
    %v1648 = vmax.f32 %v1522, 0.0
    %v1649 = vmax.f32 %v1525, 0.0
    %v1650 = vmax.f32 %v1530, 0.0
    %v1651 = vmax.f32 %v1533, 0.0
    %v1652 = vmax.f32 %v1538, 0.0
    %v1653 = vmax.f32 %v1541, 0.0
    %v1654 = vmax.f32 %v1546, 0.0
    %v1655 = vmax.f32 %v1549, 0.0
    %v1656 = vmax.f32 %v1554, 0.0
    %v1657 = vmax.f32 %v1557, 0.0
    %v1658 = vmax.f32 %v1562, 0.0
    %v1659 = vmax.f32 %v1565, 0.0
    %v1660 = vmax.f32 %v1570, 0.0
    %v1661 = vmax.f32 %v1573, 0.0
    %v1662 = vmax.f32 %v1578, 0.0
    %v1663 = vmax.f32 %v1581, 0.0
    %v1664 = vmax.f32 %v1586, 0.0
    %v1665 = vmax.f32 %v1589, 0.0
    %v1666 = vmax.f32 %v1594, 0.0
    %v1667 = vmax.f32 %v1597, 0.0
    %v1668 = vmax.f32 %v1602, 0.0
    %v1669 = vmax.f32 %v1605, 0.0
    %v1670 = vmax.f32 %v1610, 0.0
    %v1671 = vmax.f32 %v1613, 0.0
    %v1672 = vmax.f32 %v1618, 0.0
    %v1673 = vmax.f32 %v1621, 0.0
    %v1674 = vmax.f32 %v1626, 0.0
    %v1675 = vmax.f32 %v1629, 0.0
    %v1676 = vmax.f32 %v1634, 0.0
    %v1677 = vmax.f32 %v1637, 0.0
    %v1678 = vmax.f32 %v1642, 0.0
    %v1679 = vmax.f32 %v1645, 0.0
    %v1680 = vpack.c.bf16 %v1649, %v1648
    %v1681 = vpack.c.bf16 %v1651, %v1650
    %v1682 = vpack.c.bf16 %v1653, %v1652
    %v1683 = vpack.c.bf16 %v1655, %v1654
    %v1684 = vpack.c.bf16 %v1657, %v1656
    %v1685 = vpack.c.bf16 %v1659, %v1658
    %v1686 = vpack.c.bf16 %v1661, %v1660
    %v1687 = vpack.c.bf16 %v1663, %v1662
    %v1688 = vpack.c.bf16 %v1665, %v1664
    %v1689 = vpack.c.bf16 %v1667, %v1666
    %v1690 = vpack.c.bf16 %v1669, %v1668
    %v1691 = vpack.c.bf16 %v1671, %v1670
    %v1692 = vpack.c.bf16 %v1673, %v1672
    %v1693 = vpack.c.bf16 %v1675, %v1674
    %v1694 = vpack.c.bf16 %v1677, %v1676
    %v1695 = vpack.c.bf16 %v1679, %v1678
    %v1696 = vld [vmem:[#allocation5] sm:$0xf]
    %v1697 = vld [vmem:[#allocation5 + $0x4] sm:$0xf]
    %v1698 = vld [vmem:[#allocation5 + $0x8] sm:$0xf]
    %v1699 = vld [vmem:[#allocation5 + $0xc] sm:$0xf]
    %v1700 = vld [vmem:[#allocation5 + $0x10] sm:$0xf]
    %v1701 = vld [vmem:[#allocation5 + $0x14] sm:$0xf]
    %v1702 = vld [vmem:[#allocation5 + $0x18] sm:$0xf]
    %v1703 = vld [vmem:[#allocation5 + $0x1c] sm:$0xf]
    %v1704 = vld [vmem:[#allocation5 + $0x20] sm:$0xf]
    %v1705 = vld [vmem:[#allocation5 + $0x24] sm:$0xf]
    %v1706 = vld [vmem:[#allocation5 + $0x28] sm:$0xf]
    %v1707 = vld [vmem:[#allocation5 + $0x2c] sm:$0xf]
    %v1708 = vld [vmem:[#allocation5 + $0x30] sm:$0xf]
    %v1709 = vld [vmem:[#allocation5 + $0x34] sm:$0xf]
    %v1710 = vld [vmem:[#allocation5 + $0x38] sm:$0xf]
    %v1711 = vld [vmem:[#allocation5 + $0x3c] sm:$0xf]
    %v1712 = vld [vmem:[%s8] sm:$0x1]
    %v1714 = vlaneseq
    %v1715 = vshrl.u32 %v1714, 7
    %v1716 = vsub.s32 0, %v1715
    %v1717 = vrot.slane %v1712, %v1716
    %v1735 = vunpack.c.l.b16 %v1696
    %v1736 = vunpack.c.l.b16 %v1697
    %v1737 = vunpack.c.l.b16 %v1698
    %v1738 = vunpack.c.l.b16 %v1699
    %v1739 = vunpack.c.l.b16 %v1700
    %v1740 = vunpack.c.l.b16 %v1701
    %v1741 = vunpack.c.l.b16 %v1702
    %v1742 = vunpack.c.l.b16 %v1703
    %v1743 = vunpack.c.l.b16 %v1704
    %v1744 = vunpack.c.l.b16 %v1705
    %v1745 = vunpack.c.l.b16 %v1706
    %v1746 = vunpack.c.l.b16 %v1707
    %v1747 = vunpack.c.l.b16 %v1708
    %v1748 = vunpack.c.l.b16 %v1709
    %v1749 = vunpack.c.l.b16 %v1710
    %v1750 = vunpack.c.l.b16 %v1711
    %v1751 = vpack.c.b16 %v1736, %v1735
    %v1752 = vpack.c.b16 %v1738, %v1737
    %v1753 = vpack.c.b16 %v1740, %v1739
    %v1754 = vpack.c.b16 %v1742, %v1741
    %v1755 = vpack.c.b16 %v1744, %v1743
    %v1756 = vpack.c.b16 %v1746, %v1745
    %v1757 = vpack.c.b16 %v1748, %v1747
    %v1758 = vpack.c.b16 %v1750, %v1749
    %1767 = vmatprep.subr.bf16.mxu0 0
    %1768 = vmatpush1.bf16.msra.mxu0 %v1751
    %1769 = vmatprep.subr.bf16.mxu0 0
    %1770 = vmatpush1.bf16.msra.mxu0 %v1752
    %1771 = vmatprep.subr.bf16.mxu0 0
    %1772 = vmatpush1.bf16.msra.mxu0 %v1753
    %1773 = vmatprep.subr.bf16.mxu0 0
    %1774 = vmatpush1.bf16.msra.mxu0 %v1754
    %1775 = vmatprep.subr.bf16.mxu0 0
    %1776 = vmatpush1.bf16.msra.mxu0 %v1755
    %1777 = vmatprep.subr.bf16.mxu0 0
    %1778 = vmatpush1.bf16.msra.mxu0 %v1756
    %1779 = vmatprep.subr.bf16.mxu0 0
    %1780 = vmatpush1.bf16.msra.mxu0 %v1757
    %1781 = vmatprep.subr.bf16.mxu0 0
    %1782 = vmatpush1.bf16.msra.mxu0 %v1758
    %1783 = vmatprep.subr.bf16.mxu0 0
    %1784 = vmatpush1.bf16.msra.mxu0 0
    %1785 = vmatprep.subr.bf16.mxu0 0
    %1786 = vmatpush1.bf16.msra.mxu0 0
    %1787 = vmatprep.subr.bf16.mxu0 0
    %1788 = vmatpush1.bf16.msra.mxu0 0
    %1789 = vmatprep.subr.bf16.mxu0 0
    %1790 = vmatpush1.bf16.msra.mxu0 0
    %1791 = vmatprep.subr.bf16.mxu0 0
    %1792 = vmatpush1.bf16.msra.mxu0 0
    %1793 = vmatprep.subr.bf16.mxu0 0
    %1794 = vmatpush1.bf16.msra.mxu0 0
    %1795 = vmatprep.subr.bf16.mxu0 0
    %1796 = vmatpush1.bf16.msra.mxu0 0
    %1797 = vmatprep.subr.bf16.mxu0 0
    %1798 = vmatpush1.bf16.msra.mxu0 0
    %1799 = vmatprep.mubr.bf16.mxu0 0
    %1800 = vmatmul.mubr.bf16.gmra.mrb[0].mxu0 %v1680
    %v1801 = vpop.f32.mrb[0].mxu0
    %v1802 = vadd.f32 %v1717, %v1801
    %v1803 = vpop.f32.mrb[0].mxu0
    %v1804 = vpop.f32.mrb[0].mxu0
    %v1805 = vadd.f32 %v1717, %v1804
    %v1806 = vpop.f32.mrb[0].mxu0
    %1807 = vmatprep.mubr.bf16.mxu0 0
    %1808 = vmatmul.mubr.bf16.gmra.mrb[0].mxu0 %v1681
    %v1809 = vpop.f32.mrb[0].mxu0
    %v1810 = vadd.f32 %v1717, %v1809
    %v1811 = vpop.f32.mrb[0].mxu0
    %v1812 = vpop.f32.mrb[0].mxu0
    %v1813 = vadd.f32 %v1717, %v1812
    %v1814 = vpop.f32.mrb[0].mxu0
    %1815 = vmatprep.mubr.bf16.mxu0 0
    %1816 = vmatmul.mubr.bf16.gmra.mrb[0].mxu0 %v1682
    %v1817 = vpop.f32.mrb[0].mxu0
    %v1818 = vadd.f32 %v1717, %v1817
    %v1819 = vpop.f32.mrb[0].mxu0
    %v1820 = vpop.f32.mrb[0].mxu0
    %v1821 = vadd.f32 %v1717, %v1820
    %v1822 = vpop.f32.mrb[0].mxu0
    %1823 = vmatprep.mubr.bf16.mxu0 0
    %1824 = vmatmul.mubr.bf16.gmra.mrb[0].mxu0 %v1683
    %v1825 = vpop.f32.mrb[0].mxu0
    %v1826 = vadd.f32 %v1717, %v1825
    %v1827 = vpop.f32.mrb[0].mxu0
    %v1828 = vpop.f32.mrb[0].mxu0
    %v1829 = vadd.f32 %v1717, %v1828
    %v1830 = vpop.f32.mrb[0].mxu0
    %1831 = vmatprep.mubr.bf16.mxu0 0
    %1832 = vmatmul.mubr.bf16.gmra.mrb[0].mxu0 %v1684
    %v1833 = vpop.f32.mrb[0].mxu0
    %v1834 = vadd.f32 %v1717, %v1833
    %v1835 = vpop.f32.mrb[0].mxu0
    %v1836 = vpop.f32.mrb[0].mxu0
    %v1837 = vadd.f32 %v1717, %v1836
    %v1838 = vpop.f32.mrb[0].mxu0
    %1839 = vmatprep.mubr.bf16.mxu0 0
    %1840 = vmatmul.mubr.bf16.gmra.mrb[0].mxu0 %v1685
    %v1841 = vpop.f32.mrb[0].mxu0
    %v1842 = vadd.f32 %v1717, %v1841
    %v1843 = vpop.f32.mrb[0].mxu0
    %v1844 = vpop.f32.mrb[0].mxu0
    %v1845 = vadd.f32 %v1717, %v1844
    %v1846 = vpop.f32.mrb[0].mxu0
    %1847 = vmatprep.mubr.bf16.mxu0 0
    %1848 = vmatmul.mubr.bf16.gmra.mrb[0].mxu0 %v1686
    %v1849 = vpop.f32.mrb[0].mxu0
    %v1850 = vadd.f32 %v1717, %v1849
    %v1851 = vpop.f32.mrb[0].mxu0
    %v1852 = vpop.f32.mrb[0].mxu0
    %v1853 = vadd.f32 %v1717, %v1852
    %v1854 = vpop.f32.mrb[0].mxu0
    %1855 = vmatprep.mubr.bf16.mxu0 0
    %1856 = vmatmul.mubr.bf16.gmra.mrb[0].mxu0 %v1687
    %v1857 = vpop.f32.mrb[0].mxu0
    %v1858 = vadd.f32 %v1717, %v1857
    %v1859 = vpop.f32.mrb[0].mxu0
    %v1860 = vpop.f32.mrb[0].mxu0
    %v1861 = vadd.f32 %v1717, %v1860
    %v1862 = vpop.f32.mrb[0].mxu0
    %1863 = vmatprep.mubr.bf16.mxu0 0
    %1864 = vmatmul.mubr.bf16.gmra.mrb[0].mxu0 %v1688
    %v1865 = vpop.f32.mrb[0].mxu0
    %v1866 = vadd.f32 %v1717, %v1865
    %v1867 = vpop.f32.mrb[0].mxu0
    %v1868 = vpop.f32.mrb[0].mxu0
    %v1869 = vadd.f32 %v1717, %v1868
    %v1870 = vpop.f32.mrb[0].mxu0
    %1871 = vmatprep.mubr.bf16.mxu0 0
    %1872 = vmatmul.mubr.bf16.gmra.mrb[0].mxu0 %v1689
    %v1873 = vpop.f32.mrb[0].mxu0
    %v1874 = vadd.f32 %v1717, %v1873
    %v1875 = vpop.f32.mrb[0].mxu0
    %v1876 = vpop.f32.mrb[0].mxu0
    %v1877 = vadd.f32 %v1717, %v1876
    %v1878 = vpop.f32.mrb[0].mxu0
    %1879 = vmatprep.mubr.bf16.mxu0 0
    %1880 = vmatmul.mubr.bf16.gmra.mrb[0].mxu0 %v1690
    %v1881 = vpop.f32.mrb[0].mxu0
    %v1882 = vadd.f32 %v1717, %v1881
    %v1883 = vpop.f32.mrb[0].mxu0
    %v1884 = vpop.f32.mrb[0].mxu0
    %v1885 = vadd.f32 %v1717, %v1884
    %v1886 = vpop.f32.mrb[0].mxu0
    %1887 = vmatprep.mubr.bf16.mxu0 0
    %1888 = vmatmul.mubr.bf16.gmra.mrb[0].mxu0 %v1691
    %v1889 = vpop.f32.mrb[0].mxu0
    %v1890 = vadd.f32 %v1717, %v1889
    %v1891 = vpop.f32.mrb[0].mxu0
    %v1892 = vpop.f32.mrb[0].mxu0
    %v1893 = vadd.f32 %v1717, %v1892
    %v1894 = vpop.f32.mrb[0].mxu0
    %1895 = vmatprep.mubr.bf16.mxu0 0
    %1896 = vmatmul.mubr.bf16.gmra.mrb[0].mxu0 %v1692
    %v1897 = vpop.f32.mrb[0].mxu0
    %v1898 = vadd.f32 %v1717, %v1897
    %v1899 = vpop.f32.mrb[0].mxu0
    %v1900 = vpop.f32.mrb[0].mxu0
    %v1901 = vadd.f32 %v1717, %v1900
    %v1902 = vpop.f32.mrb[0].mxu0
    %1903 = vmatprep.mubr.bf16.mxu0 0
    %1904 = vmatmul.mubr.bf16.gmra.mrb[0].mxu0 %v1693
    %v1905 = vpop.f32.mrb[0].mxu0
    %v1906 = vadd.f32 %v1717, %v1905
    %v1907 = vpop.f32.mrb[0].mxu0
    %v1908 = vpop.f32.mrb[0].mxu0
    %v1909 = vadd.f32 %v1717, %v1908
    %v1910 = vpop.f32.mrb[0].mxu0
    %1911 = vmatprep.mubr.bf16.mxu0 0
    %1912 = vmatmul.mubr.bf16.gmra.mrb[0].mxu0 %v1694
    %v1913 = vpop.f32.mrb[0].mxu0
    %v1914 = vadd.f32 %v1717, %v1913
    %v1915 = vpop.f32.mrb[0].mxu0
    %v1916 = vpop.f32.mrb[0].mxu0
    %v1917 = vadd.f32 %v1717, %v1916
    %v1918 = vpop.f32.mrb[0].mxu0
    %1919 = vmatprep.mubr.bf16.mxu0 0
    %1920 = vmatmul.mubr.bf16.gmra.mrb[0].mxu0 %v1695
    %v1921 = vpop.f32.mrb[0].mxu0
    %v1922 = vadd.f32 %v1717, %v1921
    %v1923 = vpop.f32.mrb[0].mxu0
    %v1924 = vpop.f32.mrb[0].mxu0
    %v1925 = vadd.f32 %v1717, %v1924
    %v1926 = vpop.f32.mrb[0].mxu0
    %1927 = vdwg.mxu0
    %1928 = vst [vmem:[#allocation7] sm:$0xff] %v1802
    %1929 = vst [vmem:[#allocation7 + $0x8] sm:$0xff] %v1805
    %1930 = vst [vmem:[#allocation7 + $0x10] sm:$0xff] %v1810
    %1931 = vst [vmem:[#allocation7 + $0x18] sm:$0xff] %v1813
    %1932 = vst [vmem:[#allocation7 + $0x20] sm:$0xff] %v1818
    %1933 = vst [vmem:[#allocation7 + $0x28] sm:$0xff] %v1821
    %1934 = vst [vmem:[#allocation7 + $0x30] sm:$0xff] %v1826
    %1935 = vst [vmem:[#allocation7 + $0x38] sm:$0xff] %v1829
    %1936 = vst [vmem:[#allocation7 + $0x40] sm:$0xff] %v1834
    %1937 = vst [vmem:[#allocation7 + $0x48] sm:$0xff] %v1837
    %1938 = vst [vmem:[#allocation7 + $0x50] sm:$0xff] %v1842
    %1939 = vst [vmem:[#allocation7 + $0x58] sm:$0xff] %v1845
    %1940 = vst [vmem:[#allocation7 + $0x60] sm:$0xff] %v1850
    %1941 = vst [vmem:[#allocation7 + $0x68] sm:$0xff] %v1853
    %1942 = vst [vmem:[#allocation7 + $0x70] sm:$0xff] %v1858
    %1943 = vst [vmem:[#allocation7 + $0x78] sm:$0xff] %v1861
    %1944 = vst [vmem:[#allocation7 + $0x80] sm:$0xff] %v1866
    %1945 = vst [vmem:[#allocation7 + $0x88] sm:$0xff] %v1869
    %1946 = vst [vmem:[#allocation7 + $0x90] sm:$0xff] %v1874
    %1947 = vst [vmem:[#allocation7 + $0x98] sm:$0xff] %v1877
    %1948 = vst [vmem:[#allocation7 + $0xa0] sm:$0xff] %v1882
    %1949 = vst [vmem:[#allocation7 + $0xa8] sm:$0xff] %v1885
    %1950 = vst [vmem:[#allocation7 + $0xb0] sm:$0xff] %v1890
    %1951 = vst [vmem:[#allocation7 + $0xb8] sm:$0xff] %v1893
    %1952 = vst [vmem:[#allocation7 + $0xc0] sm:$0xff] %v1898
    %1953 = vst [vmem:[#allocation7 + $0xc8] sm:$0xff] %v1901
    %1954 = vst [vmem:[#allocation7 + $0xd0] sm:$0xff] %v1906
    %1955 = vst [vmem:[#allocation7 + $0xd8] sm:$0xff] %v1909
    %1956 = vst [vmem:[#allocation7 + $0xe0] sm:$0xff] %v1914
    %1957 = vst [vmem:[#allocation7 + $0xe8] sm:$0xff] %v1917
    %1958 = vst [vmem:[#allocation7 + $0xf0] sm:$0xff] %v1922
    %1959 = vst [vmem:[#allocation7 + $0xf8] sm:$0xff] %v1925
    // Predicated region
    $region46: #{tpu_custom_call.1} parent=1 // pred_check
      _
    $region47: #{tpu_custom_call.1} parent=1 // pred_check_branch
      %1961 = sbr.rel (0) target = $region49
    $region48: #{tpu_custom_call.1} parent=1 // pred_region
      %s1963 = ssub.s32 4096, 4096
      %1964 = vsyncadd [#allocation4], %s1963
      %s1965 = sshll.u32 [#allocation7], 4
      %s1966 = int_to_ptr.vmem [resolvable:$true] %s1965
      %1971 = dma.vmem_to_hbm [thread:$0]  %s1966, 4096, %s9, [#allocation4], 128, 128, 8
    $region49: #{tpu_custom_call.1} parent=1 // pred_fallthru
      _
    // Predicated region
    $region50: #{tpu_custom_call.1} parent=1 // pred_check
      _
    $region51: #{tpu_custom_call.1} parent=1 // pred_check_branch
      %1973 = sbr.rel (0) target = $region53
    $region52: #{tpu_custom_call.1} parent=1 // pred_region
      %1974 = dma.done [#allocation4], 4096
    $region53: #{tpu_custom_call.1} parent=1 // pred_fallthru
      _
    %1975 = vsyncpa [#allocation3], 1
    %1976 = vsyncpa [#allocation6], 1
    %1977 = vsyncpa [#allocation4], 1

</llo_original>
